<compile_context>
chip_gen: v7x
topology: tpu7x:2x2x1
jax: 0.10.0
libtpu: 0.0.40
codegen_flags: <defaults>
</compile_context>

<pallas_src>
from functools import partial

import jax
import jax.numpy as jnp
from jax import lax
from jax.experimental import pallas as pl
from jax.experimental.pallas import tpu as pltpu

# ---------------- model hyper-parameters (match nn.Module __init__) ----------
DIM = 4                           # channels of the feature map
HEADS = 4
DIM_HEAD = 32
NUM_MEM_KV = 4
HIDDEN = HEADS * DIM_HEAD         # 128
ATTN_SCALE = DIM_HEAD ** (-0.5)
EPS = 1e-12                       # F.normalize eps


# ---------------- fused kernel: batch_block elements per grid step -----------
def fused_kernel(x_ref, wq_ref, wk_ref, wv_ref, g1_ref, mk_ref, mv_ref,
                 wout_ref, bout_ref, g2_ref, mask_ref, o_ref):
    # x_ref   : (B_BLK, c, n)      channels-first token slabs
    # wq/wk/wv: (HIDDEN, c)        1x1 conv weight rows (no bias)
    # g1_ref  : (c, 1)             first RMSNorm gain, pre-scaled by sqrt(dim)
    # mk/mv   : (HIDDEN, m)        mem_kv, heads stacked on sublanes
    # wout_ref: (c, HIDDEN)        to_out 1x1 conv weight
    # bout_ref: (c, 1)             to_out bias
    # g2_ref  : (c, 1)             second RMSNorm gain, pre-scaled by sqrt(dim)
    # mask_ref: (HIDDEN, HIDDEN)   precomputed block-diagonal head mask (0/1 f32)
    # o_ref   : (B_BLK, c, n)
    b_blk, c, n = x_ref.shape

    # small resident operands (fetched once; constant index_map keeps them in VMEM)
    wq = wq_ref[...]
    wk = wk_ref[...]
    wv = wv_ref[...]
    wout = wout_ref[...]
    g1s = g1_ref[...]
    g2s = g2_ref[...]
    bout = bout_ref[...]
    mk = mk_ref[...]
    mv = mv_ref[...]
    mask = mask_ref[...]
    ones_n = jnp.ones((1, n), jnp.float32)           # hoisted out of the bb loop
    ones_m = jnp.ones((1, NUM_MEM_KV), jnp.float32)

    for bb in range(b_blk):                          # static unroll (B_BLK small)
        x = x_ref[bb]                                # (c, n)

        # ---- RMSNorm over channels: x / max(||x||, eps) * (g * sqrt(dim))
        ssq = jnp.sum(x * x, axis=0, keepdims=True)                  # (1, n)
        xn = x * lax.rsqrt(jnp.maximum(ssq, EPS * EPS)) * g1s        # (c, n)

        # ---- k path first (narrow live ranges): unnormalized exp + denominators
        k = jnp.dot(wk, xn, preferred_element_type=jnp.float32)      # (128, n)
        km = jnp.maximum(jnp.max(k, axis=1, keepdims=True),
                         jnp.max(mk, axis=1, keepdims=True))         # (128, 1)
        ke = jnp.exp(k - km)                                         # (128, n)
        ke_mem = jnp.exp(mk - km)                                    # (128, m)
        # per-row softmax denominators as a lane row (1,128) via two tiny MXU dots
        ksum = (lax.dot_general(ones_n, ke, (((1,), (1,)), ((), ())),
                                preferred_element_type=jnp.float32)
                + lax.dot_general(ones_m, ke_mem, (((1,), (1,)), ((), ())),
                                  preferred_element_type=jnp.float32))  # (1, 128)

        # ---- context (heads stacked): ctx[e_glob, d_glob] = sum_n v[e,n]*ke[d,n]
        v = jnp.dot(wv, xn, preferred_element_type=jnp.float32)      # (128, n)
        ctx = lax.dot_general(v, ke, (((1,), (1,)), ((), ())),
                              preferred_element_type=jnp.float32)    # (128, 128)
        ctx = ctx + lax.dot_general(mv, ke_mem, (((1,), (1,)), ((), ())),
                                    preferred_element_type=jnp.float32)
        ctx = ctx * mask                                             # block-diagonal

        # ---- reassociated to_out: fold w_out, k-softmax denom and attn scale
        # into a tiny (c, 128) effective weight (columns indexed by d_glob).
        w_eff = jnp.dot(wout, ctx, preferred_element_type=jnp.float32)   # (c, 128)
        w_eff = w_eff * (ATTN_SCALE / ksum)                              # (c, 128)

        # ---- q path: per-head softmax over the head-dim (sublane) axis,
        # contracted straight into the (c, n) output (no concat, no big divides).
        q = jnp.dot(wq, xn, preferred_element_type=jnp.float32)      # (128, n)
        y = None
        for hh in range(HEADS):
            s0 = hh * DIM_HEAD
            qh = q[s0:s0 + DIM_HEAD]                                 # (32, n)
            qe = jnp.exp(qh - jnp.max(qh, axis=0, keepdims=True))    # (32, n)
            qs_h = qe * (1.0 / jnp.sum(qe, axis=0, keepdims=True))   # exact recip
            yh = jnp.dot(w_eff[:, s0:s0 + DIM_HEAD], qs_h,
                         preferred_element_type=jnp.float32)         # (c, n)
            y = yh if y is None else y + yh
        y = y + bout                                                 # (c, n)

        # ---- second RMSNorm (channels)
        ssq2 = jnp.sum(y * y, axis=0, keepdims=True)
        o_ref[bb] = y * lax.rsqrt(jnp.maximum(ssq2, EPS * EPS)) * g2s


# ---------------- wrapper ------------------------------------------------------
@partial(jax.jit, static_argnames=("batch_block",))
def linear_attention_pallas(x, g1, w_qkv, mem_kv, w_out, b_out, g2, *,
                            batch_block=1):
    """x: (b, dim, h, w) NCHW float32.  Returns (b, dim, h, w).

    batch_block: elements processed per grid step. Default 1 keeps >= b grid
    steps (lets v7x shard the batch across its 2 TensorCores); set batch_block=b
    on single-TC v5e/v6e to fold the whole batch into one step and amortize the
    ~0.35us per-step overhead.
    """
    b, c, h, w = x.shape
    n = h * w
    assert b % batch_block == 0, "batch must be divisible by batch_block"
    norm_scale = float(c) ** 0.5

    # glue: pure reshapes / row slices only (no transposes, no concat)
    x_cn = x.reshape(b, c, n)                                # (b, c, n)   free
    w_qkv_m = w_qkv[:, :, 0, 0]                              # (3*HIDDEN, c)
    wq = w_qkv_m[:HIDDEN]
    wk = w_qkv_m[HIDDEN:2 * HIDDEN]
    wv = w_qkv_m[2 * HIDDEN:]
    g1_m = g1.reshape(c, 1) * norm_scale                     # pre-scaled gains
    g2_m = g2.reshape(c, 1) * norm_scale
    mk = mem_kv[0].reshape(HIDDEN, NUM_MEM_KV)               # (128, m)
    mv = mem_kv[1].reshape(HIDDEN, NUM_MEM_KV)
    w_out_m = w_out[:, :, 0, 0]                              # (c, HIDDEN)
    b_out_m = b_out.reshape(c, 1)
    head_id = jnp.arange(HIDDEN, dtype=jnp.int32) // DIM_HEAD
    mask = (head_id[:, None] == head_id[None, :]).astype(jnp.float32)  # (128,128)

    flops = 2 * b * (3 * HIDDEN * c * n                      # qkv projections
                     + HIDDEN * HIDDEN * (n + NUM_MEM_KV)    # context (+ mem_kv)
                     + HIDDEN * (n + NUM_MEM_KV)             # ksum ones-dots
                     + c * HIDDEN * HIDDEN                   # w_out @ ctx
                     + c * HIDDEN * n)                       # w_eff @ q
    transcendentals = b * (HIDDEN * (2 * n + NUM_MEM_KV) + 2 * n)
    bytes_accessed = 4 * (2 * b * c * n + 3 * HIDDEN * c + 2 * HIDDEN * NUM_MEM_KV
                          + c * HIDDEN + 3 * c + HIDDEN * HIDDEN)

    out = pl.pallas_call(
        fused_kernel,
        out_shape=jax.ShapeDtypeStruct((b, c, n), jnp.float32),
        grid=(b // batch_block,),
        in_specs=[
            pl.BlockSpec((batch_block, c, n), lambda i: (i, 0, 0)),   # x
            pl.BlockSpec((HIDDEN, c), lambda i: (0, 0)),              # w_q
            pl.BlockSpec((HIDDEN, c), lambda i: (0, 0)),              # w_k
            pl.BlockSpec((HIDDEN, c), lambda i: (0, 0)),              # w_v
            pl.BlockSpec((c, 1), lambda i: (0, 0)),                   # g1*sqrt(dim)
            pl.BlockSpec((HIDDEN, NUM_MEM_KV), lambda i: (0, 0)),     # mem_k
            pl.BlockSpec((HIDDEN, NUM_MEM_KV), lambda i: (0, 0)),     # mem_v
            pl.BlockSpec((c, HIDDEN), lambda i: (0, 0)),              # w_out
            pl.BlockSpec((c, 1), lambda i: (0, 0)),                   # b_out
            pl.BlockSpec((c, 1), lambda i: (0, 0)),                   # g2*sqrt(dim)
            pl.BlockSpec((HIDDEN, HIDDEN), lambda i: (0, 0)),         # head mask
        ],
        out_specs=pl.BlockSpec((batch_block, c, n), lambda i: (i, 0, 0)),
        compiler_params=pltpu.CompilerParams(
            dimension_semantics=("parallel",)),
        cost_estimate=pl.CostEstimate(flops=flops,
                                      transcendentals=transcendentals,
                                      bytes_accessed=bytes_accessed),
    )(x_cn, wq, wk, wv, g1_m, mk, mv, w_out_m, b_out_m, g2_m, mask)

    return out.reshape(b, c, h, w)


# ---------------- pure-JAX reference (mirrors the PyTorch forward) -------------
def linear_attention_ref(x, g1, w_qkv, mem_kv, w_out, b_out, g2):
    b, c, h, w = x.shape
    hp = jax.lax.Precision.HIGHEST
    norm_scale = float(c) ** 0.5
    nrm = jnp.sqrt(jnp.sum(x * x, axis=1, keepdims=True))
    xn = x / jnp.maximum(nrm, EPS) * g1 * norm_scale
    qkv = jnp.einsum('bchw,oc->bohw', xn, w_qkv[:, :, 0, 0], precision=hp)
    q, k, v = jnp.split(qkv, 3, axis=1)
    reshp = lambda t: t.reshape(b, HEADS, DIM_HEAD, h * w)
    q, k, v = reshp(q), reshp(k), reshp(v)
    mk = jnp.broadcast_to(mem_kv[0], (b, HEADS, DIM_HEAD, NUM_MEM_KV))
    mv = jnp.broadcast_to(mem_kv[1], (b, HEADS, DIM_HEAD, NUM_MEM_KV))
    k = jnp.concatenate([mk, k], axis=-1)
    v = jnp.concatenate([mv, v], axis=-1)
    q = jax.nn.softmax(q, axis=-2) * ATTN_SCALE
    k = jax.nn.softmax(k, axis=-1)
    context = jnp.einsum('bhdn,bhen->bhde', k, v, precision=hp)
    out = jnp.einsum('bhde,bhdn->bhen', context, q, precision=hp)
    out = out.reshape(b, HEADS * DIM_HEAD, h, w)
    y = jnp.einsum('bchw,oc->bohw', out, w_out[:, :, 0, 0], precision=hp)
    y = y + b_out[None, :, None, None]
    nrm2 = jnp.sqrt(jnp.sum(y * y, axis=1, keepdims=True))
    return y / jnp.maximum(nrm2, EPS) * g2 * norm_scale


if __name__ == "__main__":
    key = jax.random.PRNGKey(0)
    kx, k1, k2, k3, k4, k5, k6 = jax.random.split(key, 7)

    B, H, W = 2, 16, 16
    x = jax.random.normal(kx, (B, DIM, H, W), dtype=jnp.float32)

    # parameters (shapes from the PyTorch module __init__), deterministic init
    g1 = 1.0 + 0.1 * jax.random.normal(k1, (1, DIM, 1, 1), dtype=jnp.float32)
    w_qkv = 0.2 * jax.random.normal(k2, (3 * HIDDEN, DIM, 1, 1), dtype=jnp.float32)
    mem_kv = jax.random.normal(k3, (2, HEADS, DIM_HEAD, NUM_MEM_KV), dtype=jnp.float32)
    w_out = 0.2 * jax.random.normal(k4, (DIM, HIDDEN, 1, 1), dtype=jnp.float32)
    b_out = 0.1 * jax.random.normal(k5, (DIM,), dtype=jnp.float32)
    g2 = 1.0 + 0.1 * jax.random.normal(k6, (1, DIM, 1, 1), dtype=jnp.float32)

    y = linear_attention_pallas(x, g1, w_qkv, mem_kv, w_out, b_out, g2)
    y = jax.block_until_ready(y)

    y_ref = linear_attention_ref(x, g1, w_qkv, mem_kv, w_out, b_out, g2)
    assert y.shape == (B, DIM, H, W)
    assert jnp.allclose(y, y_ref, atol=2e-4, rtol=2e-4), float(jnp.max(jnp.abs(y - y_ref)))

    print("KERNEL_OK")
</pallas_src>

<mosaic_0001>
module attributes {stable_mosaic.version = 11 : i64} {
  func.func @fused_kernel(%arg0: i32, %arg1: memref<1x4x256xf32, #tpu.memory_space<vmem>>, %arg2: memref<128x4xf32, #tpu.memory_space<vmem>>, %arg3: memref<128x4xf32, #tpu.memory_space<vmem>>, %arg4: memref<128x4xf32, #tpu.memory_space<vmem>>, %arg5: memref<4x1xf32, #tpu.memory_space<vmem>>, %arg6: memref<128x4xf32, #tpu.memory_space<vmem>>, %arg7: memref<128x4xf32, #tpu.memory_space<vmem>>, %arg8: memref<4x128xf32, #tpu.memory_space<vmem>>, %arg9: memref<4x1xf32, #tpu.memory_space<vmem>>, %arg10: memref<4x1xf32, #tpu.memory_space<vmem>>, %arg11: memref<128x128xf32, #tpu.memory_space<vmem>>, %arg12: memref<1x4x256xf32, #tpu.memory_space<vmem>>) attributes {dimension_semantics = [#tpu.dimension_semantics<parallel>], iteration_bounds = array<i64: 2>, scalar_prefetch = 0 : i64, scratch_operands = 0 : i64, tpu.core_type = #tpu.core_type<tc>, window_params = [{transform_indices = @transform_0, window_bounds = array<i64: 1, 4, 256>}, {pipeline_mode = #tpu.pipeline_mode<synchronous>, transform_indices = @transform_1, window_bounds = array<i64: 128, 4>}, {pipeline_mode = #tpu.pipeline_mode<synchronous>, transform_indices = @transform_2, window_bounds = array<i64: 128, 4>}, {pipeline_mode = #tpu.pipeline_mode<synchronous>, transform_indices = @transform_3, window_bounds = array<i64: 128, 4>}, {pipeline_mode = #tpu.pipeline_mode<synchronous>, transform_indices = @transform_4, window_bounds = array<i64: 4, 1>}, {pipeline_mode = #tpu.pipeline_mode<synchronous>, transform_indices = @transform_5, window_bounds = array<i64: 128, 4>}, {pipeline_mode = #tpu.pipeline_mode<synchronous>, transform_indices = @transform_6, window_bounds = array<i64: 128, 4>}, {pipeline_mode = #tpu.pipeline_mode<synchronous>, transform_indices = @transform_7, window_bounds = array<i64: 4, 128>}, {pipeline_mode = #tpu.pipeline_mode<synchronous>, transform_indices = @transform_8, window_bounds = array<i64: 4, 1>}, {pipeline_mode = #tpu.pipeline_mode<synchronous>, transform_indices = @transform_9, window_bounds = array<i64: 4, 1>}, {pipeline_mode = #tpu.pipeline_mode<synchronous>, transform_indices = @transform_10, window_bounds = array<i64: 128, 128>}, {transform_indices = @transform_11, window_bounds = array<i64: 1, 4, 256>}]} {
    %c0 = arith.constant 0 : index
    %c0_0 = arith.constant 0 : index
    %0 = vector.load %arg2[%c0, %c0_0] : memref<128x4xf32, #tpu.memory_space<vmem>>, vector<128x4xf32>
    %c0_1 = arith.constant 0 : index
    %c0_2 = arith.constant 0 : index
    %1 = vector.load %arg3[%c0_1, %c0_2] : memref<128x4xf32, #tpu.memory_space<vmem>>, vector<128x4xf32>
    %c0_3 = arith.constant 0 : index
    %c0_4 = arith.constant 0 : index
    %2 = vector.load %arg4[%c0_3, %c0_4] : memref<128x4xf32, #tpu.memory_space<vmem>>, vector<128x4xf32>
    %c0_5 = arith.constant 0 : index
    %c0_6 = arith.constant 0 : index
    %3 = vector.load %arg8[%c0_5, %c0_6] : memref<4x128xf32, #tpu.memory_space<vmem>>, vector<4x128xf32>
    %c0_7 = arith.constant 0 : index
    %c0_8 = arith.constant 0 : index
    %4 = vector.load %arg5[%c0_7, %c0_8] : memref<4x1xf32, #tpu.memory_space<vmem>>, vector<4x1xf32>
    %c0_9 = arith.constant 0 : index
    %c0_10 = arith.constant 0 : index
    %5 = vector.load %arg10[%c0_9, %c0_10] : memref<4x1xf32, #tpu.memory_space<vmem>>, vector<4x1xf32>
    %c0_11 = arith.constant 0 : index
    %c0_12 = arith.constant 0 : index
    %6 = vector.load %arg9[%c0_11, %c0_12] : memref<4x1xf32, #tpu.memory_space<vmem>>, vector<4x1xf32>
    %c0_13 = arith.constant 0 : index
    %c0_14 = arith.constant 0 : index
    %7 = vector.load %arg6[%c0_13, %c0_14] : memref<128x4xf32, #tpu.memory_space<vmem>>, vector<128x4xf32>
    %c0_15 = arith.constant 0 : index
    %c0_16 = arith.constant 0 : index
    %8 = vector.load %arg7[%c0_15, %c0_16] : memref<128x4xf32, #tpu.memory_space<vmem>>, vector<128x4xf32>
    %c0_17 = arith.constant 0 : index
    %c0_18 = arith.constant 0 : index
    %9 = vector.load %arg11[%c0_17, %c0_18] : memref<128x128xf32, #tpu.memory_space<vmem>>, vector<128x128xf32>
    %cst = arith.constant 1.000000e+00 : f32
    %10 = vector.broadcast %cst : f32 to vector<1x256xf32>
    %cst_19 = arith.constant 1.000000e+00 : f32
    %11 = vector.broadcast %cst_19 : f32 to vector<1x4xf32>
    %c0_20 = arith.constant 0 : index
    %c0_21 = arith.constant 0 : index
    %c0_22 = arith.constant 0 : index
    %12 = vector.load %arg1[%c0_20, %c0_21, %c0_22] : memref<1x4x256xf32, #tpu.memory_space<vmem>>, vector<1x4x256xf32>
    %13 = vector.shape_cast %12 : vector<1x4x256xf32> to vector<4x256xf32>
    %14 = arith.mulf %13, %13 : vector<4x256xf32>
    %cst_23 = arith.constant dense<0.000000e+00> : vector<256xf32>
    %15 = vector.multi_reduction <add>, %14, %cst_23 [0] : vector<4x256xf32> to vector<256xf32>
    %16 = vector.shape_cast %15 : vector<256xf32> to vector<1x256xf32>
    %cst_24 = arith.constant 1.000000e-24 : f32
    %17 = vector.broadcast %cst_24 : f32 to vector<1x256xf32>
    %18 = arith.maximumf %16, %17 : vector<1x256xf32>
    %19 = math.rsqrt %18 : vector<1x256xf32>
    %20 = vector.broadcast %19 : vector<1x256xf32> to vector<4x256xf32>
    %21 = arith.mulf %13, %20 : vector<4x256xf32>
    %22 = vector.broadcast %4 : vector<4x1xf32> to vector<4x256xf32>
    %23 = arith.mulf %21, %22 : vector<4x256xf32>
    %cst_25 = arith.constant dense<0.000000e+00> : vector<128x256xf32>
    %24 = tpu.matmul %1, %23, %cst_25 {dimension_numbers = #tpu.dot_dimension_numbers<[1], [0], [0], [1], [0, 0, 1, 1], [], []>} : vector<128x4xf32>, vector<4x256xf32>, vector<128x256xf32> -> vector<128x256xf32>
    %cst_26 = arith.constant dense<0xFF800000> : vector<128xf32>
    %25 = vector.multi_reduction <maximumf>, %24, %cst_26 [1] : vector<128x256xf32> to vector<128xf32>
    %26 = vector.shape_cast %25 : vector<128xf32> to vector<128x1xf32>
    %cst_27 = arith.constant dense<0xFF800000> : vector<128xf32>
    %27 = vector.multi_reduction <maximumf>, %7, %cst_27 [1] : vector<128x4xf32> to vector<128xf32>
    %28 = vector.shape_cast %27 : vector<128xf32> to vector<128x1xf32>
    %29 = arith.maximumf %26, %28 : vector<128x1xf32>
    %30 = vector.broadcast %29 : vector<128x1xf32> to vector<128x256xf32>
    %31 = arith.subf %24, %30 : vector<128x256xf32>
    %32 = math.exp %31 : vector<128x256xf32>
    %33 = vector.broadcast %29 : vector<128x1xf32> to vector<128x4xf32>
    %34 = arith.subf %7, %33 : vector<128x4xf32>
    %35 = math.exp %34 : vector<128x4xf32>
    %cst_28 = arith.constant dense<0.000000e+00> : vector<1x128xf32>
    %36 = tpu.matmul %10, %32, %cst_28 {dimension_numbers = #tpu.dot_dimension_numbers<[1], [1], [0], [0], [0, 0, 1, 0], [], []>} : vector<1x256xf32>, vector<128x256xf32>, vector<1x128xf32> -> vector<1x128xf32>
    %cst_29 = arith.constant dense<0.000000e+00> : vector<1x128xf32>
    %37 = tpu.matmul %11, %35, %cst_29 {dimension_numbers = #tpu.dot_dimension_numbers<[1], [1], [0], [0], [0, 0, 1, 0], [], []>} : vector<1x4xf32>, vector<128x4xf32>, vector<1x128xf32> -> vector<1x128xf32>
    %38 = arith.addf %36, %37 : vector<1x128xf32>
    %cst_30 = arith.constant dense<0.000000e+00> : vector<128x256xf32>
    %39 = tpu.matmul %2, %23, %cst_30 {dimension_numbers = #tpu.dot_dimension_numbers<[1], [0], [0], [1], [0, 0, 1, 1], [], []>} : vector<128x4xf32>, vector<4x256xf32>, vector<128x256xf32> -> vector<128x256xf32>
    %cst_31 = arith.constant dense<0.000000e+00> : vector<128x128xf32>
    %40 = tpu.matmul %39, %32, %cst_31 {dimension_numbers = #tpu.dot_dimension_numbers<[1], [1], [0], [0], [0, 0, 1, 0], [], []>} : vector<128x256xf32>, vector<128x256xf32>, vector<128x128xf32> -> vector<128x128xf32>
    %cst_32 = arith.constant dense<0.000000e+00> : vector<128x128xf32>
    %41 = tpu.matmul %8, %35, %cst_32 {dimension_numbers = #tpu.dot_dimension_numbers<[1], [1], [0], [0], [0, 0, 1, 0], [], []>} : vector<128x4xf32>, vector<128x4xf32>, vector<128x128xf32> -> vector<128x128xf32>
    %42 = arith.addf %40, %41 : vector<128x128xf32>
    %43 = arith.mulf %42, %9 : vector<128x128xf32>
    %cst_33 = arith.constant dense<0.000000e+00> : vector<4x128xf32>
    %44 = tpu.matmul %3, %43, %cst_33 {dimension_numbers = #tpu.dot_dimension_numbers<[1], [0], [0], [1], [0, 0, 1, 1], [], []>} : vector<4x128xf32>, vector<128x128xf32>, vector<4x128xf32> -> vector<4x128xf32>
    %cst_34 = arith.constant 0.176776692 : f32
    %45 = vector.broadcast %cst_34 : f32 to vector<1x128xf32>
    %46 = arith.divf %45, %38 : vector<1x128xf32>
    %47 = vector.broadcast %46 : vector<1x128xf32> to vector<4x128xf32>
    %48 = arith.mulf %44, %47 : vector<4x128xf32>
    %cst_35 = arith.constant dense<0.000000e+00> : vector<128x256xf32>
    %49 = tpu.matmul %0, %23, %cst_35 {dimension_numbers = #tpu.dot_dimension_numbers<[1], [0], [0], [1], [0, 0, 1, 1], [], []>} : vector<128x4xf32>, vector<4x256xf32>, vector<128x256xf32> -> vector<128x256xf32>
    %50 = vector.extract_strided_slice %49 {offsets = [0, 0], sizes = [32, 256], strides = [1, 1]} : vector<128x256xf32> to vector<32x256xf32>
    %cst_36 = arith.constant dense<0xFF800000> : vector<256xf32>
    %51 = vector.multi_reduction <maximumf>, %50, %cst_36 [0] : vector<32x256xf32> to vector<256xf32>
    %52 = vector.shape_cast %51 : vector<256xf32> to vector<1x256xf32>
    %53 = vector.broadcast %52 : vector<1x256xf32> to vector<32x256xf32>
    %54 = arith.subf %50, %53 : vector<32x256xf32>
    %55 = math.exp %54 : vector<32x256xf32>
    %cst_37 = arith.constant dense<0.000000e+00> : vector<256xf32>
    %56 = vector.multi_reduction <add>, %55, %cst_37 [0] : vector<32x256xf32> to vector<256xf32>
    %57 = vector.shape_cast %56 : vector<256xf32> to vector<1x256xf32>
    %cst_38 = arith.constant 1.000000e+00 : f32
    %58 = vector.broadcast %cst_38 : f32 to vector<1x256xf32>
    %59 = arith.divf %58, %57 : vector<1x256xf32>
    %60 = vector.broadcast %59 : vector<1x256xf32> to vector<32x256xf32>
    %61 = arith.mulf %55, %60 : vector<32x256xf32>
    %62 = vector.extract_strided_slice %48 {offsets = [0, 0], sizes = [4, 32], strides = [1, 1]} : vector<4x128xf32> to vector<4x32xf32>
    %cst_39 = arith.constant dense<0.000000e+00> : vector<4x256xf32>
    %63 = tpu.matmul %62, %61, %cst_39 {dimension_numbers = #tpu.dot_dimension_numbers<[1], [0], [0], [1], [0, 0, 1, 1], [], []>} : vector<4x32xf32>, vector<32x256xf32>, vector<4x256xf32> -> vector<4x256xf32>
    %64 = vector.extract_strided_slice %49 {offsets = [32, 0], sizes = [32, 256], strides = [1, 1]} : vector<128x256xf32> to vector<32x256xf32>
    %cst_40 = arith.constant dense<0xFF800000> : vector<256xf32>
    %65 = vector.multi_reduction <maximumf>, %64, %cst_40 [0] : vector<32x256xf32> to vector<256xf32>
    %66 = vector.shape_cast %65 : vector<256xf32> to vector<1x256xf32>
    %67 = vector.broadcast %66 : vector<1x256xf32> to vector<32x256xf32>
    %68 = arith.subf %64, %67 : vector<32x256xf32>
    %69 = math.exp %68 : vector<32x256xf32>
    %cst_41 = arith.constant dense<0.000000e+00> : vector<256xf32>
    %70 = vector.multi_reduction <add>, %69, %cst_41 [0] : vector<32x256xf32> to vector<256xf32>
    %71 = vector.shape_cast %70 : vector<256xf32> to vector<1x256xf32>
    %cst_42 = arith.constant 1.000000e+00 : f32
    %72 = vector.broadcast %cst_42 : f32 to vector<1x256xf32>
    %73 = arith.divf %72, %71 : vector<1x256xf32>
    %74 = vector.broadcast %73 : vector<1x256xf32> to vector<32x256xf32>
    %75 = arith.mulf %69, %74 : vector<32x256xf32>
    %76 = vector.extract_strided_slice %48 {offsets = [0, 32], sizes = [4, 32], strides = [1, 1]} : vector<4x128xf32> to vector<4x32xf32>
    %cst_43 = arith.constant dense<0.000000e+00> : vector<4x256xf32>
    %77 = tpu.matmul %76, %75, %cst_43 {dimension_numbers = #tpu.dot_dimension_numbers<[1], [0], [0], [1], [0, 0, 1, 1], [], []>} : vector<4x32xf32>, vector<32x256xf32>, vector<4x256xf32> -> vector<4x256xf32>
    %78 = arith.addf %63, %77 : vector<4x256xf32>
    %79 = vector.extract_strided_slice %49 {offsets = [64, 0], sizes = [32, 256], strides = [1, 1]} : vector<128x256xf32> to vector<32x256xf32>
    %cst_44 = arith.constant dense<0xFF800000> : vector<256xf32>
    %80 = vector.multi_reduction <maximumf>, %79, %cst_44 [0] : vector<32x256xf32> to vector<256xf32>
    %81 = vector.shape_cast %80 : vector<256xf32> to vector<1x256xf32>
    %82 = vector.broadcast %81 : vector<1x256xf32> to vector<32x256xf32>
    %83 = arith.subf %79, %82 : vector<32x256xf32>
    %84 = math.exp %83 : vector<32x256xf32>
    %cst_45 = arith.constant dense<0.000000e+00> : vector<256xf32>
    %85 = vector.multi_reduction <add>, %84, %cst_45 [0] : vector<32x256xf32> to vector<256xf32>
    %86 = vector.shape_cast %85 : vector<256xf32> to vector<1x256xf32>
    %cst_46 = arith.constant 1.000000e+00 : f32
    %87 = vector.broadcast %cst_46 : f32 to vector<1x256xf32>
    %88 = arith.divf %87, %86 : vector<1x256xf32>
    %89 = vector.broadcast %88 : vector<1x256xf32> to vector<32x256xf32>
    %90 = arith.mulf %84, %89 : vector<32x256xf32>
    %91 = vector.extract_strided_slice %48 {offsets = [0, 64], sizes = [4, 32], strides = [1, 1]} : vector<4x128xf32> to vector<4x32xf32>
    %cst_47 = arith.constant dense<0.000000e+00> : vector<4x256xf32>
    %92 = tpu.matmul %91, %90, %cst_47 {dimension_numbers = #tpu.dot_dimension_numbers<[1], [0], [0], [1], [0, 0, 1, 1], [], []>} : vector<4x32xf32>, vector<32x256xf32>, vector<4x256xf32> -> vector<4x256xf32>
    %93 = arith.addf %78, %92 : vector<4x256xf32>
    %94 = vector.extract_strided_slice %49 {offsets = [96, 0], sizes = [32, 256], strides = [1, 1]} : vector<128x256xf32> to vector<32x256xf32>
    %cst_48 = arith.constant dense<0xFF800000> : vector<256xf32>
    %95 = vector.multi_reduction <maximumf>, %94, %cst_48 [0] : vector<32x256xf32> to vector<256xf32>
    %96 = vector.shape_cast %95 : vector<256xf32> to vector<1x256xf32>
    %97 = vector.broadcast %96 : vector<1x256xf32> to vector<32x256xf32>
    %98 = arith.subf %94, %97 : vector<32x256xf32>
    %99 = math.exp %98 : vector<32x256xf32>
    %cst_49 = arith.constant dense<0.000000e+00> : vector<256xf32>
    %100 = vector.multi_reduction <add>, %99, %cst_49 [0] : vector<32x256xf32> to vector<256xf32>
    %101 = vector.shape_cast %100 : vector<256xf32> to vector<1x256xf32>
    %cst_50 = arith.constant 1.000000e+00 : f32
    %102 = vector.broadcast %cst_50 : f32 to vector<1x256xf32>
    %103 = arith.divf %102, %101 : vector<1x256xf32>
    %104 = vector.broadcast %103 : vector<1x256xf32> to vector<32x256xf32>
    %105 = arith.mulf %99, %104 : vector<32x256xf32>
    %106 = vector.extract_strided_slice %48 {offsets = [0, 96], sizes = [4, 32], strides = [1, 1]} : vector<4x128xf32> to vector<4x32xf32>
    %cst_51 = arith.constant dense<0.000000e+00> : vector<4x256xf32>
    %107 = tpu.matmul %106, %105, %cst_51 {dimension_numbers = #tpu.dot_dimension_numbers<[1], [0], [0], [1], [0, 0, 1, 1], [], []>} : vector<4x32xf32>, vector<32x256xf32>, vector<4x256xf32> -> vector<4x256xf32>
    %108 = arith.addf %93, %107 : vector<4x256xf32>
    %109 = vector.broadcast %6 : vector<4x1xf32> to vector<4x256xf32>
    %110 = arith.addf %108, %109 : vector<4x256xf32>
    %111 = arith.mulf %110, %110 : vector<4x256xf32>
    %cst_52 = arith.constant dense<0.000000e+00> : vector<256xf32>
    %112 = vector.multi_reduction <add>, %111, %cst_52 [0] : vector<4x256xf32> to vector<256xf32>
    %113 = vector.shape_cast %112 : vector<256xf32> to vector<1x256xf32>
    %cst_53 = arith.constant 1.000000e-24 : f32
    %114 = vector.broadcast %cst_53 : f32 to vector<1x256xf32>
    %115 = arith.maximumf %113, %114 : vector<1x256xf32>
    %116 = math.rsqrt %115 : vector<1x256xf32>
    %117 = vector.broadcast %116 : vector<1x256xf32> to vector<4x256xf32>
    %118 = arith.mulf %110, %117 : vector<4x256xf32>
    %119 = vector.broadcast %5 : vector<4x1xf32> to vector<4x256xf32>
    %120 = arith.mulf %118, %119 : vector<4x256xf32>
    %c0_54 = arith.constant 0 : index
    %c0_55 = arith.constant 0 : index
    %c0_56 = arith.constant 0 : index
    %121 = vector.load %arg12[%c0_54, %c0_55, %c0_56] : memref<1x4x256xf32, #tpu.memory_space<vmem>>, vector<1x4x256xf32>
    %122 = vector.shape_cast %121 : vector<1x4x256xf32> to vector<4x256xf32>
    %123 = vector.shape_cast %120 : vector<4x256xf32> to vector<1x4x256xf32>
    tpu.vector_store %arg12[%c0_54, %c0_55, %c0_56], %123 {strides = array<i32>} : memref<1x4x256xf32, #tpu.memory_space<vmem>>, vector<1x4x256xf32>,
    return
  }
  func.func @transform_0(%arg0: i32) -> (i32, i32, i32) {
    %c0_i32 = arith.constant 0 : i32
    %c0_i32_0 = arith.constant 0 : i32
    %c0_i32_1 = arith.constant 0 : i32
    return %arg0, %c0_i32, %c0_i32_0 : i32, i32, i32
  }
  func.func @transform_1(%arg0: i32) -> (i32, i32) {
    %c0_i32 = arith.constant 0 : i32
    %c0_i32_0 = arith.constant 0 : i32
    %c0_i32_1 = arith.constant 0 : i32
    return %c0_i32, %c0_i32_0 : i32, i32
  }
  func.func @transform_2(%arg0: i32) -> (i32, i32) {
    %c0_i32 = arith.constant 0 : i32
    %c0_i32_0 = arith.constant 0 : i32
    %c0_i32_1 = arith.constant 0 : i32
    return %c0_i32, %c0_i32_0 : i32, i32
  }
  func.func @transform_3(%arg0: i32) -> (i32, i32) {
    %c0_i32 = arith.constant 0 : i32
    %c0_i32_0 = arith.constant 0 : i32
    %c0_i32_1 = arith.constant 0 : i32
    return %c0_i32, %c0_i32_0 : i32, i32
  }
  func.func @transform_4(%arg0: i32) -> (i32, i32) {
    %c0_i32 = arith.constant 0 : i32
    %c0_i32_0 = arith.constant 0 : i32
    %c0_i32_1 = arith.constant 0 : i32
    return %c0_i32, %c0_i32_0 : i32, i32
  }
  func.func @transform_5(%arg0: i32) -> (i32, i32) {
    %c0_i32 = arith.constant 0 : i32
    %c0_i32_0 = arith.constant 0 : i32
    %c0_i32_1 = arith.constant 0 : i32
    return %c0_i32, %c0_i32_0 : i32, i32
  }
  func.func @transform_6(%arg0: i32) -> (i32, i32) {
    %c0_i32 = arith.constant 0 : i32
    %c0_i32_0 = arith.constant 0 : i32
    %c0_i32_1 = arith.constant 0 : i32
    return %c0_i32, %c0_i32_0 : i32, i32
  }
  func.func @transform_7(%arg0: i32) -> (i32, i32) {
    %c0_i32 = arith.constant 0 : i32
    %c0_i32_0 = arith.constant 0 : i32
    %c0_i32_1 = arith.constant 0 : i32
    return %c0_i32, %c0_i32_0 : i32, i32
  }
  func.func @transform_8(%arg0: i32) -> (i32, i32) {
    %c0_i32 = arith.constant 0 : i32
    %c0_i32_0 = arith.constant 0 : i32
    %c0_i32_1 = arith.constant 0 : i32
    return %c0_i32, %c0_i32_0 : i32, i32
  }
  func.func @transform_9(%arg0: i32) -> (i32, i32) {
    %c0_i32 = arith.constant 0 : i32
    %c0_i32_0 = arith.constant 0 : i32
    %c0_i32_1 = arith.constant 0 : i32
    return %c0_i32, %c0_i32_0 : i32, i32
  }
  func.func @transform_10(%arg0: i32) -> (i32, i32) {
    %c0_i32 = arith.constant 0 : i32
    %c0_i32_0 = arith.constant 0 : i32
    %c0_i32_1 = arith.constant 0 : i32
    return %c0_i32, %c0_i32_0 : i32, i32
  }
  func.func @transform_11(%arg0: i32) -> (i32, i32, i32) {
    %c0_i32 = arith.constant 0 : i32
    %c0_i32_0 = arith.constant 0 : i32
    %c0_i32_1 = arith.constant 0 : i32
    return %arg0, %c0_i32, %c0_i32_0 : i32, i32, i32
  }
}

</mosaic_0001>

<llo_original>
// kernel: linear_attention_pallas.1
$region0: #{linear_attention_pallas.1}
  #allocation0 [shape = 'u32[]', space=smem, size = 0x4, offset = 0x4, fixed_abs, tag = 'smem constant byte address 0x4 - core index']
  #allocation1 [shape = 'u32[144,128]{1,0:T(1,128)}', space=vmem, size = 0x12000, scoped, tag = 'internal scratch']
  %s0 = inlined_call_operand.vmem [shape: f32[2,4,256], index: 0, kind: input, shape index: {}]
  %s1 = inlined_call_operand.vmem [shape: f32[128,4], index: 1, kind: input, shape index: {}]
  %s2 = inlined_call_operand.vmem [shape: f32[128,4], index: 2, kind: input, shape index: {}]
  %s3 = inlined_call_operand.vmem [shape: f32[128,4], index: 3, kind: input, shape index: {}]
  %s4 = inlined_call_operand.vmem [shape: f32[4,1], index: 4, kind: input, shape index: {}]
  %s5 = inlined_call_operand.vmem [shape: f32[128,4], index: 5, kind: input, shape index: {}]
  %s6 = inlined_call_operand.vmem [shape: f32[128,4], index: 6, kind: input, shape index: {}]
  %s7 = inlined_call_operand.vmem [shape: f32[4,128], index: 7, kind: input, shape index: {}]
  %s8 = inlined_call_operand.vmem [shape: f32[4,1], index: 8, kind: input, shape index: {}]
  %s9 = inlined_call_operand.vmem [shape: f32[4,1], index: 9, kind: input, shape index: {}]
  %s10 = inlined_call_operand.vmem [shape: f32[128,128], index: 10, kind: input, shape index: {}]
  %s11 = inlined_call_operand.vmem [shape: f32[2,4,256], index: 11, kind: output, shape index: {}]
  %s12 = sld [smem:[#allocation0]]
  $region77: #{linear_attention_pallas.1} parent=0
    _
  %s14 = ssub.s32 1, %s12
  %s15 = scalar_select 0, %s14, %s12
  loop: start=0, step=1, limit=4
  $region2: #{linear_attention_pallas.1} parent=0 // loop_pre_header
    _
  $region3: #{linear_attention_pallas.1} parent=0 // loop_header
    %s17 = sphi 0, %s21
    %p18 = scmp.ge.s32.totalorder %s17, 4
    %s27 = sphi 0, %s29
    %s30 = sphi 0, %s27
    %s31 = sphi 0, %s30
    %s47 = sphi 0, %s31
    %s51 = sphi 0, %s51
    %s53 = sphi 0, %s51
    %s54 = sphi 0, %s53
    %s68 = sphi 0, %s54
    %s72 = sphi 0, %s72
    %s74 = sphi 0, %s72
    %s75 = sphi 0, %s74
    %s89 = sphi 0, %s75
    %s93 = sphi 0, %s93
    %s95 = sphi 0, %s93
    %s96 = sphi 0, %s95
    %s110 = sphi 0, %s96
    %s114 = sphi 0, %s114
    %s116 = sphi 0, %s114
    %s117 = sphi 0, %s116
    %s131 = sphi 0, %s117
    %s135 = sphi 0, %s135
    %s137 = sphi 0, %s135
    %s138 = sphi 0, %s137
    %s152 = sphi 0, %s138
    %s156 = sphi 0, %s156
    %s158 = sphi 0, %s156
    %s159 = sphi 0, %s158
    %s173 = sphi 0, %s159
    %s177 = sphi 0, %s177
    %s179 = sphi 0, %s177
    %s180 = sphi 0, %s179
    %s194 = sphi 0, %s180
    %s198 = sphi 0, %s198
    %s200 = sphi 0, %s198
    %s201 = sphi 0, %s200
    %s215 = sphi 0, %s201
    %s219 = sphi 0, %s219
    %s221 = sphi 0, %s219
    %s222 = sphi 0, %s221
    %s236 = sphi 0, %s222
    %s240 = sphi 0, %s240
    %s242 = sphi 0, %s240
    %s243 = sphi 0, %s242
    %s257 = sphi 0, %s243
    %s263 = sphi 0, %s265
    %s266 = sphi 0, %s263
    %s267 = sphi 0, %s266
    %s283 = sphi 0, %s267
  $region4: #{linear_attention_pallas.1} parent=0 // loop_header_branch
    %20 = sbr.rel (%p18) target = $region8
  $region5: #{linear_attention_pallas.1} parent=0 // loop_body
    %s22 = ssub.s32 %s17, 1
    %s23 = ssub.s32 %s17, 2
    %s24 = sadd.s32 %s17, 1
    %s25 = ssub.s32 %s17, %s24
    %p26 = scmp.eq.s32.totalorder %s25, 0
    %s28 = sadd.s32 %s27, 1
    %s29 = scalar_select %p26, %s27, %s28
    %p32 = pneg %p26
    %p33 = scmp.eq.s32.totalorder %s17, 1
    %p34 = por %p32, %p33
    %p35 = scmp.ne.s32.totalorder %s27, %s30
    %p36 = scmp.eq.s32.totalorder %s17, 0
    %p37 = por %p35, %p36
    %p38 = scmp.ne.s32.totalorder %s27, %s30
    %p39 = scmp.eq.s32.totalorder %s22, 1
    %p40 = por %p38, %p39
    %p41 = scmp.ne.s32.totalorder %s30, %s31
    %p42 = scmp.eq.s32.totalorder %s22, 0
    %p43 = por %p41, %p42
    %p44 = scmp.ne.s32.totalorder %s30, %s31
    %p45 = scmp.eq.s32.totalorder %s23, 1
    %p46 = por %p44, %p45
    %p48 = scmp.ne.s32.totalorder %s31, %s47
    %p49 = scmp.eq.s32.totalorder %s23, 0
    %p50 = por %p48, %p49
    %s52 = sadd.s32 %s51, 1
    %p55 = scmp.eq.s32.totalorder %s17, 1
    %p56 = scmp.ne.s32.totalorder %s51, %s53
    %p57 = scmp.eq.s32.totalorder %s17, 0
    %p58 = por %p56, %p57
    %p59 = scmp.ne.s32.totalorder %s51, %s53
    %p60 = scmp.eq.s32.totalorder %s22, 1
    %p61 = por %p59, %p60
    %p62 = scmp.ne.s32.totalorder %s53, %s54
    %p63 = scmp.eq.s32.totalorder %s22, 0
    %p64 = por %p62, %p63
    %p65 = scmp.ne.s32.totalorder %s53, %s54
    %p66 = scmp.eq.s32.totalorder %s23, 1
    %p67 = por %p65, %p66
    %p69 = scmp.ne.s32.totalorder %s54, %s68
    %p70 = scmp.eq.s32.totalorder %s23, 0
    %p71 = por %p69, %p70
    %s73 = sadd.s32 %s72, 1
    %p76 = scmp.eq.s32.totalorder %s17, 1
    %p77 = scmp.ne.s32.totalorder %s72, %s74
    %p78 = scmp.eq.s32.totalorder %s17, 0
    %p79 = por %p77, %p78
    %p80 = scmp.ne.s32.totalorder %s72, %s74
    %p81 = scmp.eq.s32.totalorder %s22, 1
    %p82 = por %p80, %p81
    %p83 = scmp.ne.s32.totalorder %s74, %s75
    %p84 = scmp.eq.s32.totalorder %s22, 0
    %p85 = por %p83, %p84
    %p86 = scmp.ne.s32.totalorder %s74, %s75
    %p87 = scmp.eq.s32.totalorder %s23, 1
    %p88 = por %p86, %p87
    %p90 = scmp.ne.s32.totalorder %s75, %s89
    %p91 = scmp.eq.s32.totalorder %s23, 0
    %p92 = por %p90, %p91
    %s94 = sadd.s32 %s93, 1
    %p97 = scmp.eq.s32.totalorder %s17, 1
    %p98 = scmp.ne.s32.totalorder %s93, %s95
    %p99 = scmp.eq.s32.totalorder %s17, 0
    %p100 = por %p98, %p99
    %p101 = scmp.ne.s32.totalorder %s93, %s95
    %p102 = scmp.eq.s32.totalorder %s22, 1
    %p103 = por %p101, %p102
    %p104 = scmp.ne.s32.totalorder %s95, %s96
    %p105 = scmp.eq.s32.totalorder %s22, 0
    %p106 = por %p104, %p105
    %p107 = scmp.ne.s32.totalorder %s95, %s96
    %p108 = scmp.eq.s32.totalorder %s23, 1
    %p109 = por %p107, %p108
    %p111 = scmp.ne.s32.totalorder %s96, %s110
    %p112 = scmp.eq.s32.totalorder %s23, 0
    %p113 = por %p111, %p112
    %s115 = sadd.s32 %s114, 1
    %p118 = scmp.eq.s32.totalorder %s17, 1
    %p119 = scmp.ne.s32.totalorder %s114, %s116
    %p120 = scmp.eq.s32.totalorder %s17, 0
    %p121 = por %p119, %p120
    %p122 = scmp.ne.s32.totalorder %s114, %s116
    %p123 = scmp.eq.s32.totalorder %s22, 1
    %p124 = por %p122, %p123
    %p125 = scmp.ne.s32.totalorder %s116, %s117
    %p126 = scmp.eq.s32.totalorder %s22, 0
    %p127 = por %p125, %p126
    %p128 = scmp.ne.s32.totalorder %s116, %s117
    %p129 = scmp.eq.s32.totalorder %s23, 1
    %p130 = por %p128, %p129
    %p132 = scmp.ne.s32.totalorder %s117, %s131
    %p133 = scmp.eq.s32.totalorder %s23, 0
    %p134 = por %p132, %p133
    %s136 = sadd.s32 %s135, 1
    %p139 = scmp.eq.s32.totalorder %s17, 1
    %p140 = scmp.ne.s32.totalorder %s135, %s137
    %p141 = scmp.eq.s32.totalorder %s17, 0
    %p142 = por %p140, %p141
    %p143 = scmp.ne.s32.totalorder %s135, %s137
    %p144 = scmp.eq.s32.totalorder %s22, 1
    %p145 = por %p143, %p144
    %p146 = scmp.ne.s32.totalorder %s137, %s138
    %p147 = scmp.eq.s32.totalorder %s22, 0
    %p148 = por %p146, %p147
    %p149 = scmp.ne.s32.totalorder %s137, %s138
    %p150 = scmp.eq.s32.totalorder %s23, 1
    %p151 = por %p149, %p150
    %p153 = scmp.ne.s32.totalorder %s138, %s152
    %p154 = scmp.eq.s32.totalorder %s23, 0
    %p155 = por %p153, %p154
    %s157 = sadd.s32 %s156, 1
    %p160 = scmp.eq.s32.totalorder %s17, 1
    %p161 = scmp.ne.s32.totalorder %s156, %s158
    %p162 = scmp.eq.s32.totalorder %s17, 0
    %p163 = por %p161, %p162
    %p164 = scmp.ne.s32.totalorder %s156, %s158
    %p165 = scmp.eq.s32.totalorder %s22, 1
    %p166 = por %p164, %p165
    %p167 = scmp.ne.s32.totalorder %s158, %s159
    %p168 = scmp.eq.s32.totalorder %s22, 0
    %p169 = por %p167, %p168
    %p170 = scmp.ne.s32.totalorder %s158, %s159
    %p171 = scmp.eq.s32.totalorder %s23, 1
    %p172 = por %p170, %p171
    %p174 = scmp.ne.s32.totalorder %s159, %s173
    %p175 = scmp.eq.s32.totalorder %s23, 0
    %p176 = por %p174, %p175
    %s178 = sadd.s32 %s177, 1
    %p181 = scmp.eq.s32.totalorder %s17, 1
    %p182 = scmp.ne.s32.totalorder %s177, %s179
    %p183 = scmp.eq.s32.totalorder %s17, 0
    %p184 = por %p182, %p183
    %p185 = scmp.ne.s32.totalorder %s177, %s179
    %p186 = scmp.eq.s32.totalorder %s22, 1
    %p187 = por %p185, %p186
    %p188 = scmp.ne.s32.totalorder %s179, %s180
    %p189 = scmp.eq.s32.totalorder %s22, 0
    %p190 = por %p188, %p189
    %p191 = scmp.ne.s32.totalorder %s179, %s180
    %p192 = scmp.eq.s32.totalorder %s23, 1
    %p193 = por %p191, %p192
    %p195 = scmp.ne.s32.totalorder %s180, %s194
    %p196 = scmp.eq.s32.totalorder %s23, 0
    %p197 = por %p195, %p196
    %s199 = sadd.s32 %s198, 1
    %p202 = scmp.eq.s32.totalorder %s17, 1
    %p203 = scmp.ne.s32.totalorder %s198, %s200
    %p204 = scmp.eq.s32.totalorder %s17, 0
    %p205 = por %p203, %p204
    %p206 = scmp.ne.s32.totalorder %s198, %s200
    %p207 = scmp.eq.s32.totalorder %s22, 1
    %p208 = por %p206, %p207
    %p209 = scmp.ne.s32.totalorder %s200, %s201
    %p210 = scmp.eq.s32.totalorder %s22, 0
    %p211 = por %p209, %p210
    %p212 = scmp.ne.s32.totalorder %s200, %s201
    %p213 = scmp.eq.s32.totalorder %s23, 1
    %p214 = por %p212, %p213
    %p216 = scmp.ne.s32.totalorder %s201, %s215
    %p217 = scmp.eq.s32.totalorder %s23, 0
    %p218 = por %p216, %p217
    %s220 = sadd.s32 %s219, 1
    %p223 = scmp.eq.s32.totalorder %s17, 1
    %p224 = scmp.ne.s32.totalorder %s219, %s221
    %p225 = scmp.eq.s32.totalorder %s17, 0
    %p226 = por %p224, %p225
    %p227 = scmp.ne.s32.totalorder %s219, %s221
    %p228 = scmp.eq.s32.totalorder %s22, 1
    %p229 = por %p227, %p228
    %p230 = scmp.ne.s32.totalorder %s221, %s222
    %p231 = scmp.eq.s32.totalorder %s22, 0
    %p232 = por %p230, %p231
    %p233 = scmp.ne.s32.totalorder %s221, %s222
    %p234 = scmp.eq.s32.totalorder %s23, 1
    %p235 = por %p233, %p234
    %p237 = scmp.ne.s32.totalorder %s222, %s236
    %p238 = scmp.eq.s32.totalorder %s23, 0
    %p239 = por %p237, %p238
    %s241 = sadd.s32 %s240, 1
    %p244 = scmp.eq.s32.totalorder %s17, 1
    %p245 = scmp.ne.s32.totalorder %s240, %s242
    %p246 = scmp.eq.s32.totalorder %s17, 0
    %p247 = por %p245, %p246
    %p248 = scmp.ne.s32.totalorder %s240, %s242
    %p249 = scmp.eq.s32.totalorder %s22, 1
    %p250 = por %p248, %p249
    %p251 = scmp.ne.s32.totalorder %s242, %s243
    %p252 = scmp.eq.s32.totalorder %s22, 0
    %p253 = por %p251, %p252
    %p254 = scmp.ne.s32.totalorder %s242, %s243
    %p255 = scmp.eq.s32.totalorder %s23, 1
    %p256 = por %p254, %p255
    %p258 = scmp.ne.s32.totalorder %s243, %s257
    %p259 = scmp.eq.s32.totalorder %s23, 0
    %p260 = por %p258, %p259
    %s261 = ssub.s32 %s17, %s24
    %p262 = scmp.eq.s32.totalorder %s261, 0
    %s264 = sadd.s32 %s263, 1
    %s265 = scalar_select %p262, %s263, %s264
    %p268 = pneg %p262
    %p269 = scmp.eq.s32.totalorder %s17, 1
    %p270 = por %p268, %p269
    %p271 = scmp.ne.s32.totalorder %s263, %s266
    %p272 = scmp.eq.s32.totalorder %s17, 0
    %p273 = por %p271, %p272
    %p274 = scmp.ne.s32.totalorder %s263, %s266
    %p275 = scmp.eq.s32.totalorder %s22, 1
    %p276 = por %p274, %p275
    %p277 = scmp.ne.s32.totalorder %s266, %s267
    %p278 = scmp.eq.s32.totalorder %s22, 0
    %p279 = por %p277, %p278
    %p280 = scmp.ne.s32.totalorder %s266, %s267
    %p281 = scmp.eq.s32.totalorder %s23, 1
    %p282 = por %p280, %p281
    %p284 = scmp.ne.s32.totalorder %s267, %s283
    %p285 = scmp.eq.s32.totalorder %s23, 0
    %p286 = por %p284, %p285
    %p287 = scmp.le.s32.totalorder 1, %s17
    %p288 = scmp.lt.s32.totalorder %s17, 3
    %p289 = pnand %p287, %p288
    %p290 = pneg %p289
    // Predicated region
    $region9: #{linear_attention_pallas.1} parent=5 // pred_check
      _
    $region10: #{linear_attention_pallas.1} parent=5 // pred_check_branch
      %292 = sbr.rel (%p289) target = $region12
    $region11: #{linear_attention_pallas.1} parent=5 // pred_region
      %s293 = ssub.s32 %s17, 1
      // Predicated region
      $region13: #{linear_attention_pallas.1} parent=11 // pred_check
        %p294 = pneg %p64
      $region14: #{linear_attention_pallas.1} parent=11 // pred_check_branch
        %296 = sbr.rel (%p294) target = $region16
      $region15: #{linear_attention_pallas.1} parent=11 // pred_region
        _
      $region16: #{linear_attention_pallas.1} parent=11 // pred_fallthru
        _
      // Predicated region
      $region17: #{linear_attention_pallas.1} parent=11 // pred_check
        %p297 = pneg %p85
      $region18: #{linear_attention_pallas.1} parent=11 // pred_check_branch
        %299 = sbr.rel (%p297) target = $region20
      $region19: #{linear_attention_pallas.1} parent=11 // pred_region
        _
      $region20: #{linear_attention_pallas.1} parent=11 // pred_fallthru
        _
      // Predicated region
      $region21: #{linear_attention_pallas.1} parent=11 // pred_check
        %p300 = pneg %p106
      $region22: #{linear_attention_pallas.1} parent=11 // pred_check_branch
        %302 = sbr.rel (%p300) target = $region24
      $region23: #{linear_attention_pallas.1} parent=11 // pred_region
        _
      $region24: #{linear_attention_pallas.1} parent=11 // pred_fallthru
        _
      // Predicated region
      $region25: #{linear_attention_pallas.1} parent=11 // pred_check
        %p303 = pneg %p127
      $region26: #{linear_attention_pallas.1} parent=11 // pred_check_branch
        %305 = sbr.rel (%p303) target = $region28
      $region27: #{linear_attention_pallas.1} parent=11 // pred_region
        _
      $region28: #{linear_attention_pallas.1} parent=11 // pred_fallthru
        _
      // Predicated region
      $region29: #{linear_attention_pallas.1} parent=11 // pred_check
        %p306 = pneg %p148
      $region30: #{linear_attention_pallas.1} parent=11 // pred_check_branch
        %308 = sbr.rel (%p306) target = $region32
      $region31: #{linear_attention_pallas.1} parent=11 // pred_region
        _
      $region32: #{linear_attention_pallas.1} parent=11 // pred_fallthru
        _
      // Predicated region
      $region33: #{linear_attention_pallas.1} parent=11 // pred_check
        %p309 = pneg %p169
      $region34: #{linear_attention_pallas.1} parent=11 // pred_check_branch
        %311 = sbr.rel (%p309) target = $region36
      $region35: #{linear_attention_pallas.1} parent=11 // pred_region
        _
      $region36: #{linear_attention_pallas.1} parent=11 // pred_fallthru
        _
      // Predicated region
      $region37: #{linear_attention_pallas.1} parent=11 // pred_check
        %p312 = pneg %p190
      $region38: #{linear_attention_pallas.1} parent=11 // pred_check_branch
        %314 = sbr.rel (%p312) target = $region40
      $region39: #{linear_attention_pallas.1} parent=11 // pred_region
        _
      $region40: #{linear_attention_pallas.1} parent=11 // pred_fallthru
        _
      // Predicated region
      $region41: #{linear_attention_pallas.1} parent=11 // pred_check
        %p315 = pneg %p211
      $region42: #{linear_attention_pallas.1} parent=11 // pred_check_branch
        %317 = sbr.rel (%p315) target = $region44
      $region43: #{linear_attention_pallas.1} parent=11 // pred_region
        _
      $region44: #{linear_attention_pallas.1} parent=11 // pred_fallthru
        _
      // Predicated region
      $region45: #{linear_attention_pallas.1} parent=11 // pred_check
        %p318 = pneg %p232
      $region46: #{linear_attention_pallas.1} parent=11 // pred_check_branch
        %320 = sbr.rel (%p318) target = $region48
      $region47: #{linear_attention_pallas.1} parent=11 // pred_region
        _
      $region48: #{linear_attention_pallas.1} parent=11 // pred_fallthru
        _
      // Predicated region
      $region49: #{linear_attention_pallas.1} parent=11 // pred_check
        %p321 = pneg %p253
      $region50: #{linear_attention_pallas.1} parent=11 // pred_check_branch
        %323 = sbr.rel (%p321) target = $region52
      $region51: #{linear_attention_pallas.1} parent=11 // pred_region
        _
      $region52: #{linear_attention_pallas.1} parent=11 // pred_fallthru
        _
    $region12: #{linear_attention_pallas.1} parent=5 // pred_fallthru
      _
    %p324 = scmp.lt.s32.totalorder %s17, 2
    // Predicated region
    $region53: #{linear_attention_pallas.1} parent=5 // pred_check
      %p325 = pneg %p324
    $region54: #{linear_attention_pallas.1} parent=5 // pred_check_branch
      %327 = sbr.rel (%p325) target = $region56
    $region55: #{linear_attention_pallas.1} parent=5 // pred_region
      // Predicated region
      $region57: #{linear_attention_pallas.1} parent=55 // pred_check
        %p328 = pneg %p37
      $region58: #{linear_attention_pallas.1} parent=55 // pred_check_branch
        %330 = sbr.rel (%p328) target = $region60
      $region59: #{linear_attention_pallas.1} parent=55 // pred_region
        %p331 = scmp.lt.s32.totalorder %s17, 1
        %s332 = scalar_select %p331, %s17, 1
        %s333 = smul.addr %s332, 2
        %s334 = smul.addr %s333, 4
        %s335 = scalar_lea.vmem %s0, %s334
      $region60: #{linear_attention_pallas.1} parent=55 // pred_fallthru
        _
    $region56: #{linear_attention_pallas.1} parent=5 // pred_fallthru
      _
    %p336 = scmp.le.s32.totalorder 1, %s17
    %p337 = scmp.lt.s32.totalorder %s17, 3
    %p338 = pnand %p336, %p337
    %p339 = pneg %p338
    // Predicated region
    $region61: #{linear_attention_pallas.1} parent=5 // pred_check
      _
    $region62: #{linear_attention_pallas.1} parent=5 // pred_check_branch
      %341 = sbr.rel (%p338) target = $region64
    $region63: #{linear_attention_pallas.1} parent=5 // pred_region
      %s342 = ssub.s32 %s17, 1
      %p343 = scmp.lt.s32.totalorder %s22, 1
      %s344 = scalar_select %p343, %s22, 1
      %s345 = smul.addr %s344, 2
      %s346 = smul.addr %s345, 4
      %s347 = scalar_lea.vmem %s0, %s346
      %p348 = pneg %p43
      %p349 = pneg %p40
      %p350 = pneg %p64
      %p351 = pneg %p61
      %p352 = pneg %p85
      %p353 = pneg %p82
      %p354 = pneg %p106
      %p355 = pneg %p103
      %p356 = pneg %p127
      %p357 = pneg %p124
      %p358 = pneg %p148
      %p359 = pneg %p145
      %p360 = pneg %p169
      %p361 = pneg %p166
      %p362 = pneg %p190
      %p363 = pneg %p187
      %p364 = pneg %p211
      %p365 = pneg %p208
      %p366 = pneg %p232
      %p367 = pneg %p229
      %p368 = pneg %p253
      %p369 = pneg %p250
      %p370 = pneg %p279
      %p371 = pneg %p276
      %p372 = scmp.lt.s32.totalorder %s22, 1
      %s373 = scalar_select %p372, %s22, 1
      %s374 = smul.addr %s373, 2
      %s375 = smul.addr %s374, 4
      %s376 = scalar_lea.vmem %s11, %s375
      %p377 = scmp.lt.s32.totalorder %s22, 1
      %s378 = scalar_select %p377, %s22, 1
      %s379 = smul.addr %s378, 2
      %s380 = smul.addr %s379, 4
      %s381 = scalar_lea.vmem %s0, %s380
      %p382 = scmp.lt.s32.totalorder %s22, 1
      %s383 = scalar_select %p382, %s22, 1
      %s384 = smul.addr %s383, 2
      %s385 = smul.addr %s384, 4
      %s386 = scalar_lea.vmem %s11, %s385
      %v387 = vld [vmem:[%s1] sm:$0xff]
      %v388 = vld [vmem:[%s1 + $0x8] sm:$0xff]
      %v389 = vld [vmem:[%s1 + $0x10] sm:$0xff]
      %v390 = vld [vmem:[%s1 + $0x18] sm:$0xff]
      %v391 = vld [vmem:[%s1 + $0x20] sm:$0xff]
      %v392 = vld [vmem:[%s1 + $0x28] sm:$0xff]
      %v393 = vld [vmem:[%s1 + $0x30] sm:$0xff]
      %v394 = vld [vmem:[%s1 + $0x38] sm:$0xff]
      %v395 = vld [vmem:[%s1 + $0x40] sm:$0xff]
      %v396 = vld [vmem:[%s1 + $0x48] sm:$0xff]
      %v397 = vld [vmem:[%s1 + $0x50] sm:$0xff]
      %v398 = vld [vmem:[%s1 + $0x58] sm:$0xff]
      %v399 = vld [vmem:[%s1 + $0x60] sm:$0xff]
      %v400 = vld [vmem:[%s1 + $0x68] sm:$0xff]
      %v401 = vld [vmem:[%s1 + $0x70] sm:$0xff]
      %v402 = vld [vmem:[%s1 + $0x78] sm:$0xff]
      %v403 = vld [vmem:[%s2] sm:$0xff]
      %v404 = vld [vmem:[%s2 + $0x8] sm:$0xff]
      %v405 = vld [vmem:[%s2 + $0x10] sm:$0xff]
      %v406 = vld [vmem:[%s2 + $0x18] sm:$0xff]
      %v407 = vld [vmem:[%s2 + $0x20] sm:$0xff]
      %v408 = vld [vmem:[%s2 + $0x28] sm:$0xff]
      %v409 = vld [vmem:[%s2 + $0x30] sm:$0xff]
      %v410 = vld [vmem:[%s2 + $0x38] sm:$0xff]
      %v411 = vld [vmem:[%s2 + $0x40] sm:$0xff]
      %v412 = vld [vmem:[%s2 + $0x48] sm:$0xff]
      %v413 = vld [vmem:[%s2 + $0x50] sm:$0xff]
      %v414 = vld [vmem:[%s2 + $0x58] sm:$0xff]
      %v415 = vld [vmem:[%s2 + $0x60] sm:$0xff]
      %v416 = vld [vmem:[%s2 + $0x68] sm:$0xff]
      %v417 = vld [vmem:[%s2 + $0x70] sm:$0xff]
      %v418 = vld [vmem:[%s2 + $0x78] sm:$0xff]
      %v419 = vld [vmem:[%s3] sm:$0xff]
      %v420 = vld [vmem:[%s3 + $0x8] sm:$0xff]
      %v421 = vld [vmem:[%s3 + $0x10] sm:$0xff]
      %v422 = vld [vmem:[%s3 + $0x18] sm:$0xff]
      %v423 = vld [vmem:[%s3 + $0x20] sm:$0xff]
      %v424 = vld [vmem:[%s3 + $0x28] sm:$0xff]
      %v425 = vld [vmem:[%s3 + $0x30] sm:$0xff]
      %v426 = vld [vmem:[%s3 + $0x38] sm:$0xff]
      %v427 = vld [vmem:[%s3 + $0x40] sm:$0xff]
      %v428 = vld [vmem:[%s3 + $0x48] sm:$0xff]
      %v429 = vld [vmem:[%s3 + $0x50] sm:$0xff]
      %v430 = vld [vmem:[%s3 + $0x58] sm:$0xff]
      %v431 = vld [vmem:[%s3 + $0x60] sm:$0xff]
      %v432 = vld [vmem:[%s3 + $0x68] sm:$0xff]
      %v433 = vld [vmem:[%s3 + $0x70] sm:$0xff]
      %v434 = vld [vmem:[%s3 + $0x78] sm:$0xff]
      %v435 = vld [vmem:[%s7] sm:$0xf]
      %v436 = vld [vmem:[%s4] sm:$0xf]
      %v437 = vld [vmem:[%s9] sm:$0xf]
      %v438 = vld [vmem:[%s8] sm:$0xf]
      %v439 = vld [vmem:[%s5] sm:$0xff]
      %v440 = vld [vmem:[%s5 + $0x8] sm:$0xff]
      %v441 = vld [vmem:[%s5 + $0x10] sm:$0xff]
      %v442 = vld [vmem:[%s5 + $0x18] sm:$0xff]
      %v443 = vld [vmem:[%s5 + $0x20] sm:$0xff]
      %v444 = vld [vmem:[%s5 + $0x28] sm:$0xff]
      %v445 = vld [vmem:[%s5 + $0x30] sm:$0xff]
      %v446 = vld [vmem:[%s5 + $0x38] sm:$0xff]
      %v447 = vld [vmem:[%s5 + $0x40] sm:$0xff]
      %v448 = vld [vmem:[%s5 + $0x48] sm:$0xff]
      %v449 = vld [vmem:[%s5 + $0x50] sm:$0xff]
      %v450 = vld [vmem:[%s5 + $0x58] sm:$0xff]
      %v451 = vld [vmem:[%s5 + $0x60] sm:$0xff]
      %v452 = vld [vmem:[%s5 + $0x68] sm:$0xff]
      %v453 = vld [vmem:[%s5 + $0x70] sm:$0xff]
      %v454 = vld [vmem:[%s5 + $0x78] sm:$0xff]
      %v455 = vld [vmem:[%s6] sm:$0xff]
      %v456 = vld [vmem:[%s6 + $0x8] sm:$0xff]
      %v457 = vld [vmem:[%s6 + $0x10] sm:$0xff]
      %v458 = vld [vmem:[%s6 + $0x18] sm:$0xff]
      %v459 = vld [vmem:[%s6 + $0x20] sm:$0xff]
      %v460 = vld [vmem:[%s6 + $0x28] sm:$0xff]
      %v461 = vld [vmem:[%s6 + $0x30] sm:$0xff]
      %v462 = vld [vmem:[%s6 + $0x38] sm:$0xff]
      %v463 = vld [vmem:[%s6 + $0x40] sm:$0xff]
      %v464 = vld [vmem:[%s6 + $0x48] sm:$0xff]
      %v465 = vld [vmem:[%s6 + $0x50] sm:$0xff]
      %v466 = vld [vmem:[%s6 + $0x58] sm:$0xff]
      %v467 = vld [vmem:[%s6 + $0x60] sm:$0xff]
      %v468 = vld [vmem:[%s6 + $0x68] sm:$0xff]
      %v469 = vld [vmem:[%s6 + $0x70] sm:$0xff]
      %v470 = vld [vmem:[%s6 + $0x78] sm:$0xff]
      %v471 = vld [vmem:[%s10] sm:$0xff]
      %v472 = vld [vmem:[%s10 + $0x8] sm:$0xff]
      %v473 = vld [vmem:[%s10 + $0x10] sm:$0xff]
      %v474 = vld [vmem:[%s10 + $0x18] sm:$0xff]
      %v475 = vld [vmem:[%s10 + $0x20] sm:$0xff]
      %v476 = vld [vmem:[%s10 + $0x28] sm:$0xff]
      %v477 = vld [vmem:[%s10 + $0x30] sm:$0xff]
      %v478 = vld [vmem:[%s10 + $0x38] sm:$0xff]
      %v479 = vld [vmem:[%s10 + $0x40] sm:$0xff]
      %v480 = vld [vmem:[%s10 + $0x48] sm:$0xff]
      %v481 = vld [vmem:[%s10 + $0x50] sm:$0xff]
      %v482 = vld [vmem:[%s10 + $0x58] sm:$0xff]
      %v483 = vld [vmem:[%s10 + $0x60] sm:$0xff]
      %v484 = vld [vmem:[%s10 + $0x68] sm:$0xff]
      %v485 = vld [vmem:[%s10 + $0x70] sm:$0xff]
      %v486 = vld [vmem:[%s10 + $0x78] sm:$0xff]
      %v487 = vld [vmem:[%s381] sm:$0xff]
      %v488 = vmul.f32 %v487, %v487
      %v490 = vcombine.high %v488, %v488
      %vm492 = vcmask 1043456
      %v493 = vsel %vm492, %v488, 0.0
      %v494 = vrot.slane %v493, 4
      %v495 = vadd.f32 %v493, %v494
      %v496 = vrot.slane %v495, 2
      %v497 = vadd.f32 %v495, %v496
      %v498 = vrot.slane %v497, 1
      %v499 = vadd.f32 %v497, %v498
      %v500 = vsel %vm492, %v490, 0.0
      %v501 = vrot.slane %v500, 4
      %v502 = vadd.f32 %v500, %v501
      %v503 = vrot.slane %v502, 2
      %v504 = vadd.f32 %v502, %v503
      %v505 = vrot.slane %v504, 1
      %v506 = vadd.f32 %v504, %v505
      %v507 = vmax.f32 %v499, 1e-24
      %v508 = vmax.f32 %v506, 1e-24
      %v509 = vrsqrt.pop %v507
      %v510 = vrsqrt.pop %v508
      %v513 = vcombine.low %v509, %v510
      %v515 = vmul.f32 %v487, %v513
      %517 = vset.pattern.permute.xlu0 0
      %518 = vperm.xlu0 %517, %v436
      %v519 = vpop.permute.xlu0 %518
      %v521 = vunpack.c.l.s4 839922192
      %v522 = vunpack.c.0.s8 %v521
      %v523 = vlaneseq
      %v524 = vshrl.u32 %v523, 7
      %v525 = vsub.s32 %v522, %v524
      %v526 = vrot.slane %v519, %v525
      %v528 = vmul.f32 %v515, %v526
      %v530 = vcombine.high %v528, %v528
      %vm531 = vcmask 31744
      %v533 = vsel %vm531, %v403, 0
      %v536 = vsel %vm531, %v404, 0
      %v539 = vsel %vm531, %v405, 0
      %v542 = vsel %vm531, %v406, 0
      %v545 = vsel %vm531, %v407, 0
      %v548 = vsel %vm531, %v408, 0
      %v551 = vsel %vm531, %v409, 0
      %v554 = vsel %vm531, %v410, 0
      %v557 = vsel %vm531, %v411, 0
      %v560 = vsel %vm531, %v412, 0
      %v563 = vsel %vm531, %v413, 0
      %v566 = vsel %vm531, %v414, 0
      %v569 = vsel %vm531, %v415, 0
      %v572 = vsel %vm531, %v416, 0
      %v575 = vsel %vm531, %v417, 0
      %v578 = vsel %vm531, %v418, 0
      %v580 = vsel %vm492, %v528, 0
      %v582 = vsel %vm492, %v530, 0
      %584 = vmatprep.subr.mxu0 %v582
      %585 = vmatpush1.msra.mxu0 %v580
      %586 = vmatprep.subr.mxu0 0.0
      %587 = vmatpush1.msra.mxu0 0.0
      %588 = vmatprep.subr.mxu0 0.0
      %589 = vmatpush1.msra.mxu0 0.0
      %590 = vmatprep.subr.mxu0 0.0
      %591 = vmatpush1.msra.mxu0 0.0
      %592 = vmatprep.subr.mxu0 0.0
      %593 = vmatpush1.msra.mxu0 0.0
      %594 = vmatprep.subr.mxu0 0.0
      %595 = vmatpush1.msra.mxu0 0.0
      %596 = vmatprep.subr.mxu0 0.0
      %597 = vmatpush1.msra.mxu0 0.0
      %598 = vmatprep.subr.mxu0 0.0
      %599 = vmatpush1.msra.mxu0 0.0
      %600 = vmatprep.subr.mxu0 0.0
      %601 = vmatpush1.msra.mxu0 0.0
      %602 = vmatprep.subr.mxu0 0.0
      %603 = vmatpush1.msra.mxu0 0.0
      %604 = vmatprep.subr.mxu0 0.0
      %605 = vmatpush1.msra.mxu0 0.0
      %606 = vmatprep.subr.mxu0 0.0
      %607 = vmatpush1.msra.mxu0 0.0
      %608 = vmatprep.subr.mxu0 0.0
      %609 = vmatpush1.msra.mxu0 0.0
      %610 = vmatprep.subr.mxu0 0.0
      %611 = vmatpush1.msra.mxu0 0.0
      %612 = vmatprep.subr.mxu0 0.0
      %613 = vmatpush1.msra.mxu0 0.0
      %614 = vmatprep.subr.mxu0 0.0
      %615 = vmatpush1.msra.mxu0 0.0
      %616 = vmatprep.subr.mxu0 0.0
      %617 = vmatpush1.msra.mxu0 0.0
      %618 = vmatprep.subr.mxu0 0.0
      %619 = vmatpush1.msra.mxu0 0.0
      %620 = vmatprep.subr.mxu0 0.0
      %621 = vmatpush1.msra.mxu0 0.0
      %622 = vmatprep.subr.mxu0 0.0
      %623 = vmatpush1.msra.mxu0 0.0
      %624 = vmatprep.subr.mxu0 0.0
      %625 = vmatpush1.msra.mxu0 0.0
      %626 = vmatprep.subr.mxu0 0.0
      %627 = vmatpush1.msra.mxu0 0.0
      %628 = vmatprep.subr.mxu0 0.0
      %629 = vmatpush1.msra.mxu0 0.0
      %630 = vmatprep.subr.mxu0 0.0
      %631 = vmatpush1.msra.mxu0 0.0
      %632 = vmatprep.subr.mxu0 0.0
      %633 = vmatpush1.msra.mxu0 0.0
      %634 = vmatprep.subr.mxu0 0.0
      %635 = vmatpush1.msra.mxu0 0.0
      %636 = vmatprep.subr.mxu0 0.0
      %637 = vmatpush1.msra.mxu0 0.0
      %638 = vmatprep.subr.mxu0 0.0
      %639 = vmatpush1.msra.mxu0 0.0
      %640 = vmatprep.subr.mxu0 0.0
      %641 = vmatpush1.msra.mxu0 0.0
      %642 = vmatprep.subr.mxu0 0.0
      %643 = vmatpush1.msra.mxu0 0.0
      %644 = vmatprep.subr.mxu0 0.0
      %645 = vmatpush1.msra.mxu0 0.0
      %646 = vmatprep.subr.mxu0 0.0
      %647 = vmatpush1.msra.mxu0 0.0
      %648 = vmatprep.mubr.f32.mxu0 0.0
      %649 = vmatmul.mubr.f32.gmra.mrb[0].mxu0 %v533
      %v650 = vpop.f32.mrb[0].mxu0
      %v651 = vadd.f32 0.0, %v650
      %v652 = vpop.f32.mrb[0].mxu0
      %v653 = vadd.f32 0.0, %v652
      %654 = vmatprep.mubr.f32.mxu0 0.0
      %655 = vmatmul.mubr.f32.gmra.mrb[0].mxu0 %v536
      %v656 = vpop.f32.mrb[0].mxu0
      %v657 = vadd.f32 0.0, %v656
      %v658 = vpop.f32.mrb[0].mxu0
      %v659 = vadd.f32 0.0, %v658
      %660 = vmatprep.mubr.f32.mxu0 0.0
      %661 = vmatmul.mubr.f32.gmra.mrb[0].mxu0 %v539
      %v662 = vpop.f32.mrb[0].mxu0
      %v663 = vadd.f32 0.0, %v662
      %v664 = vpop.f32.mrb[0].mxu0
      %v665 = vadd.f32 0.0, %v664
      %666 = vmatprep.mubr.f32.mxu0 0.0
      %667 = vmatmul.mubr.f32.gmra.mrb[0].mxu0 %v542
      %v668 = vpop.f32.mrb[0].mxu0
      %v669 = vadd.f32 0.0, %v668
      %v670 = vpop.f32.mrb[0].mxu0
      %v671 = vadd.f32 0.0, %v670
      %672 = vmatprep.mubr.f32.mxu0 0.0
      %673 = vmatmul.mubr.f32.gmra.mrb[0].mxu0 %v545
      %v674 = vpop.f32.mrb[0].mxu0
      %v675 = vadd.f32 0.0, %v674
      %v676 = vpop.f32.mrb[0].mxu0
      %v677 = vadd.f32 0.0, %v676
      %678 = vmatprep.mubr.f32.mxu0 0.0
      %679 = vmatmul.mubr.f32.gmra.mrb[0].mxu0 %v548
      %v680 = vpop.f32.mrb[0].mxu0
      %v681 = vadd.f32 0.0, %v680
      %v682 = vpop.f32.mrb[0].mxu0
      %v683 = vadd.f32 0.0, %v682
      %684 = vmatprep.mubr.f32.mxu0 0.0
      %685 = vmatmul.mubr.f32.gmra.mrb[0].mxu0 %v551
      %v686 = vpop.f32.mrb[0].mxu0
      %v687 = vadd.f32 0.0, %v686
      %v688 = vpop.f32.mrb[0].mxu0
      %v689 = vadd.f32 0.0, %v688
      %690 = vmatprep.mubr.f32.mxu0 0.0
      %691 = vmatmul.mubr.f32.gmra.mrb[0].mxu0 %v554
      %v692 = vpop.f32.mrb[0].mxu0
      %v693 = vadd.f32 0.0, %v692
      %v694 = vpop.f32.mrb[0].mxu0
      %v695 = vadd.f32 0.0, %v694
      %696 = vmatprep.mubr.f32.mxu0 0.0
      %697 = vmatmul.mubr.f32.gmra.mrb[0].mxu0 %v557
      %v698 = vpop.f32.mrb[0].mxu0
      %v699 = vadd.f32 0.0, %v698
      %v700 = vpop.f32.mrb[0].mxu0
      %v701 = vadd.f32 0.0, %v700
      %702 = vmatprep.mubr.f32.mxu0 0.0
      %703 = vmatmul.mubr.f32.gmra.mrb[0].mxu0 %v560
      %v704 = vpop.f32.mrb[0].mxu0
      %v705 = vadd.f32 0.0, %v704
      %v706 = vpop.f32.mrb[0].mxu0
      %v707 = vadd.f32 0.0, %v706
      %708 = vmatprep.mubr.f32.mxu0 0.0
      %709 = vmatmul.mubr.f32.gmra.mrb[0].mxu0 %v563
      %v710 = vpop.f32.mrb[0].mxu0
      %v711 = vadd.f32 0.0, %v710
      %v712 = vpop.f32.mrb[0].mxu0
      %v713 = vadd.f32 0.0, %v712
      %714 = vmatprep.mubr.f32.mxu0 0.0
      %715 = vmatmul.mubr.f32.gmra.mrb[0].mxu0 %v566
      %v716 = vpop.f32.mrb[0].mxu0
      %v717 = vadd.f32 0.0, %v716
      %v718 = vpop.f32.mrb[0].mxu0
      %v719 = vadd.f32 0.0, %v718
      %720 = vmatprep.mubr.f32.mxu0 0.0
      %721 = vmatmul.mubr.f32.gmra.mrb[0].mxu0 %v569
      %v722 = vpop.f32.mrb[0].mxu0
      %v723 = vadd.f32 0.0, %v722
      %v724 = vpop.f32.mrb[0].mxu0
      %v725 = vadd.f32 0.0, %v724
      %726 = vmatprep.mubr.f32.mxu0 0.0
      %727 = vmatmul.mubr.f32.gmra.mrb[0].mxu0 %v572
      %v728 = vpop.f32.mrb[0].mxu0
      %v729 = vadd.f32 0.0, %v728
      %v730 = vpop.f32.mrb[0].mxu0
      %v731 = vadd.f32 0.0, %v730
      %732 = vmatprep.mubr.f32.mxu0 0.0
      %733 = vmatmul.mubr.f32.gmra.mrb[0].mxu0 %v575
      %v734 = vpop.f32.mrb[0].mxu0
      %v735 = vadd.f32 0.0, %v734
      %v736 = vpop.f32.mrb[0].mxu0
      %v737 = vadd.f32 0.0, %v736
      %738 = vmatprep.mubr.f32.mxu0 0.0
      %739 = vmatmul.mubr.f32.gmra.mrb[0].mxu0 %v578
      %v740 = vpop.f32.mrb[0].mxu0
      %v741 = vadd.f32 0.0, %v740
      %v742 = vpop.f32.mrb[0].mxu0
      %v743 = vadd.f32 0.0, %v742
      %744 = vdwg.mxu0
      %v745 = vmax.f32 %v651, %v653
      %746 = vmax.xlane.f32.xlu0 %v745
      %v747 = vpop.xlane.xlu0 %746
      %v748 = vmax.f32 %v657, %v659
      %749 = vmax.xlane.f32.xlu0 %v748
      %v750 = vpop.xlane.xlu0 %749
      %v751 = vmax.f32 %v663, %v665
      %752 = vmax.xlane.f32.xlu0 %v751
      %v753 = vpop.xlane.xlu0 %752
      %v754 = vmax.f32 %v669, %v671
      %755 = vmax.xlane.f32.xlu0 %v754
      %v756 = vpop.xlane.xlu0 %755
      %v757 = vmax.f32 %v675, %v677
      %758 = vmax.xlane.f32.xlu0 %v757
      %v759 = vpop.xlane.xlu0 %758
      %v760 = vmax.f32 %v681, %v683
      %761 = vmax.xlane.f32.xlu0 %v760
      %v762 = vpop.xlane.xlu0 %761
      %v763 = vmax.f32 %v687, %v689
      %764 = vmax.xlane.f32.xlu0 %v763
      %v765 = vpop.xlane.xlu0 %764
      %v766 = vmax.f32 %v693, %v695
      %767 = vmax.xlane.f32.xlu0 %v766
      %v768 = vpop.xlane.xlu0 %767
      %v769 = vmax.f32 %v699, %v701
      %770 = vmax.xlane.f32.xlu0 %v769
      %v771 = vpop.xlane.xlu0 %770
      %v772 = vmax.f32 %v705, %v707
      %773 = vmax.xlane.f32.xlu0 %v772
      %v774 = vpop.xlane.xlu0 %773
      %v775 = vmax.f32 %v711, %v713
      %776 = vmax.xlane.f32.xlu0 %v775
      %v777 = vpop.xlane.xlu0 %776
      %v778 = vmax.f32 %v717, %v719
      %779 = vmax.xlane.f32.xlu0 %v778
      %v780 = vpop.xlane.xlu0 %779
      %v781 = vmax.f32 %v723, %v725
      %782 = vmax.xlane.f32.xlu0 %v781
      %v783 = vpop.xlane.xlu0 %782
      %v784 = vmax.f32 %v729, %v731
      %785 = vmax.xlane.f32.xlu0 %v784
      %v786 = vpop.xlane.xlu0 %785
      %v787 = vmax.f32 %v735, %v737
      %788 = vmax.xlane.f32.xlu0 %v787
      %v789 = vpop.xlane.xlu0 %788
      %v790 = vmax.f32 %v741, %v743
      %791 = vmax.xlane.f32.xlu0 %v790
      %v792 = vpop.xlane.xlu0 %791
      %v793 = vsel %vm531, %v439, -inf
      %794 = vmax.xlane.f32.xlu0 %v793
      %v795 = vpop.xlane.xlu0 %794
      %v796 = vsel %vm531, %v440, -inf
      %797 = vmax.xlane.f32.xlu0 %v796
      %v798 = vpop.xlane.xlu0 %797
      %v799 = vsel %vm531, %v441, -inf
      %800 = vmax.xlane.f32.xlu0 %v799
      %v801 = vpop.xlane.xlu0 %800
      %v802 = vsel %vm531, %v442, -inf
      %803 = vmax.xlane.f32.xlu0 %v802
      %v804 = vpop.xlane.xlu0 %803
      %v805 = vsel %vm531, %v443, -inf
      %806 = vmax.xlane.f32.xlu0 %v805
      %v807 = vpop.xlane.xlu0 %806
      %v808 = vsel %vm531, %v444, -inf
      %809 = vmax.xlane.f32.xlu0 %v808
      %v810 = vpop.xlane.xlu0 %809
      %v811 = vsel %vm531, %v445, -inf
      %812 = vmax.xlane.f32.xlu0 %v811
      %v813 = vpop.xlane.xlu0 %812
      %v814 = vsel %vm531, %v446, -inf
      %815 = vmax.xlane.f32.xlu0 %v814
      %v816 = vpop.xlane.xlu0 %815
      %v817 = vsel %vm531, %v447, -inf
      %818 = vmax.xlane.f32.xlu0 %v817
      %v819 = vpop.xlane.xlu0 %818
      %v820 = vsel %vm531, %v448, -inf
      %821 = vmax.xlane.f32.xlu0 %v820
      %v822 = vpop.xlane.xlu0 %821
      %v823 = vsel %vm531, %v449, -inf
      %824 = vmax.xlane.f32.xlu0 %v823
      %v825 = vpop.xlane.xlu0 %824
      %v826 = vsel %vm531, %v450, -inf
      %827 = vmax.xlane.f32.xlu0 %v826
      %v828 = vpop.xlane.xlu0 %827
      %v829 = vsel %vm531, %v451, -inf
      %830 = vmax.xlane.f32.xlu0 %v829
      %v831 = vpop.xlane.xlu0 %830
      %v832 = vsel %vm531, %v452, -inf
      %833 = vmax.xlane.f32.xlu0 %v832
      %v834 = vpop.xlane.xlu0 %833
      %v835 = vsel %vm531, %v453, -inf
      %836 = vmax.xlane.f32.xlu0 %v835
      %v837 = vpop.xlane.xlu0 %836
      %v838 = vsel %vm531, %v454, -inf
      %839 = vmax.xlane.f32.xlu0 %v838
      %v840 = vpop.xlane.xlu0 %839
      %v841 = vmax.f32 %v747, %v795
      %v842 = vmax.f32 %v750, %v798
      %v843 = vmax.f32 %v753, %v801
      %v844 = vmax.f32 %v756, %v804
      %v845 = vmax.f32 %v759, %v807
      %v846 = vmax.f32 %v762, %v810
      %v847 = vmax.f32 %v765, %v813
      %v848 = vmax.f32 %v768, %v816
      %v849 = vmax.f32 %v771, %v819
      %v850 = vmax.f32 %v774, %v822
      %v851 = vmax.f32 %v777, %v825
      %v852 = vmax.f32 %v780, %v828
      %v853 = vmax.f32 %v783, %v831
      %v854 = vmax.f32 %v786, %v834
      %v855 = vmax.f32 %v789, %v837
      %v856 = vmax.f32 %v792, %v840
      %v857 = vsub.f32 %v651, %v841
      %v858 = vsub.f32 %v653, %v841
      %v859 = vsub.f32 %v657, %v842
      %v860 = vsub.f32 %v659, %v842
      %v861 = vsub.f32 %v663, %v843
      %v862 = vsub.f32 %v665, %v843
      %v863 = vsub.f32 %v669, %v844
      %v864 = vsub.f32 %v671, %v844
      %v865 = vsub.f32 %v675, %v845
      %v866 = vsub.f32 %v677, %v845
      %v867 = vsub.f32 %v681, %v846
      %v868 = vsub.f32 %v683, %v846
      %v869 = vsub.f32 %v687, %v847
      %v870 = vsub.f32 %v689, %v847
      %v871 = vsub.f32 %v693, %v848
      %v872 = vsub.f32 %v695, %v848
      %v873 = vsub.f32 %v699, %v849
      %v874 = vsub.f32 %v701, %v849
      %v875 = vsub.f32 %v705, %v850
      %v876 = vsub.f32 %v707, %v850
      %v877 = vsub.f32 %v711, %v851
      %v878 = vsub.f32 %v713, %v851
      %v879 = vsub.f32 %v717, %v852
      %v880 = vsub.f32 %v719, %v852
      %v881 = vsub.f32 %v723, %v853
      %v882 = vsub.f32 %v725, %v853
      %v883 = vsub.f32 %v729, %v854
      %v884 = vsub.f32 %v731, %v854
      %v885 = vsub.f32 %v735, %v855
      %v886 = vsub.f32 %v737, %v855
      %v887 = vsub.f32 %v741, %v856
      %v888 = vsub.f32 %v743, %v856
      %v889 = vmul.f32 %v857, 1.442695
      %v890 = vpow.pop %v889
      %v891 = vmul.f32 %v858, 1.442695
      %v892 = vpow.pop %v891
      %v893 = vmul.f32 %v859, 1.442695
      %v894 = vpow.pop %v893
      %v895 = vmul.f32 %v860, 1.442695
      %v896 = vpow.pop %v895
      %v897 = vmul.f32 %v861, 1.442695
      %v898 = vpow.pop %v897
      %v899 = vmul.f32 %v862, 1.442695
      %v900 = vpow.pop %v899
      %v901 = vmul.f32 %v863, 1.442695
      %v902 = vpow.pop %v901
      %v903 = vmul.f32 %v864, 1.442695
      %v904 = vpow.pop %v903
      %v905 = vmul.f32 %v865, 1.442695
      %v906 = vpow.pop %v905
      %v907 = vmul.f32 %v866, 1.442695
      %v908 = vpow.pop %v907
      %v909 = vmul.f32 %v867, 1.442695
      %v910 = vpow.pop %v909
      %v911 = vmul.f32 %v868, 1.442695
      %v912 = vpow.pop %v911
      %v913 = vmul.f32 %v869, 1.442695
      %v914 = vpow.pop %v913
      %v915 = vmul.f32 %v870, 1.442695
      %v916 = vpow.pop %v915
      %v917 = vmul.f32 %v871, 1.442695
      %v918 = vpow.pop %v917
      %v919 = vmul.f32 %v872, 1.442695
      %v920 = vpow.pop %v919
      %v921 = vmul.f32 %v873, 1.442695
      %v922 = vpow.pop %v921
      %v923 = vmul.f32 %v874, 1.442695
      %v924 = vpow.pop %v923
      %v925 = vmul.f32 %v875, 1.442695
      %v926 = vpow.pop %v925
      %v927 = vmul.f32 %v876, 1.442695
      %v928 = vpow.pop %v927
      %v929 = vmul.f32 %v877, 1.442695
      %v930 = vpow.pop %v929
      %v931 = vmul.f32 %v878, 1.442695
      %v932 = vpow.pop %v931
      %v933 = vmul.f32 %v879, 1.442695
      %v934 = vpow.pop %v933
      %v935 = vmul.f32 %v880, 1.442695
      %v936 = vpow.pop %v935
      %v937 = vmul.f32 %v881, 1.442695
      %v938 = vpow.pop %v937
      %v939 = vmul.f32 %v882, 1.442695
      %v940 = vpow.pop %v939
      %v941 = vmul.f32 %v883, 1.442695
      %v942 = vpow.pop %v941
      %v943 = vmul.f32 %v884, 1.442695
      %v944 = vpow.pop %v943
      %v945 = vmul.f32 %v885, 1.442695
      %v946 = vpow.pop %v945
      %v947 = vmul.f32 %v886, 1.442695
      %v948 = vpow.pop %v947
      %v949 = vmul.f32 %v887, 1.442695
      %v950 = vpow.pop %v949
      %v951 = vmul.f32 %v888, 1.442695
      %v952 = vpow.pop %v951
      %v953 = vsub.f32 %v439, %v841
      %v954 = vsub.f32 %v440, %v842
      %v955 = vsub.f32 %v441, %v843
      %v956 = vsub.f32 %v442, %v844
      %v957 = vsub.f32 %v443, %v845
      %v958 = vsub.f32 %v444, %v846
      %v959 = vsub.f32 %v445, %v847
      %v960 = vsub.f32 %v446, %v848
      %v961 = vsub.f32 %v447, %v849
      %v962 = vsub.f32 %v448, %v850
      %v963 = vsub.f32 %v449, %v851
      %v964 = vsub.f32 %v450, %v852
      %v965 = vsub.f32 %v451, %v853
      %v966 = vsub.f32 %v452, %v854
      %v967 = vsub.f32 %v453, %v855
      %v968 = vsub.f32 %v454, %v856
      %v969 = vmul.f32 %v953, 1.442695
      %v970 = vpow.pop %v969
      %v971 = vmul.f32 %v954, 1.442695
      %v972 = vpow.pop %v971
      %v973 = vmul.f32 %v955, 1.442695
      %v974 = vpow.pop %v973
      %v975 = vmul.f32 %v956, 1.442695
      %v976 = vpow.pop %v975
      %v977 = vmul.f32 %v957, 1.442695
      %v978 = vpow.pop %v977
      %v979 = vmul.f32 %v958, 1.442695
      %v980 = vpow.pop %v979
      %v981 = vmul.f32 %v959, 1.442695
      %v982 = vpow.pop %v981
      %v983 = vmul.f32 %v960, 1.442695
      %v984 = vpow.pop %v983
      %v985 = vmul.f32 %v961, 1.442695
      %v986 = vpow.pop %v985
      %v987 = vmul.f32 %v962, 1.442695
      %v988 = vpow.pop %v987
      %v989 = vmul.f32 %v963, 1.442695
      %v990 = vpow.pop %v989
      %v991 = vmul.f32 %v964, 1.442695
      %v992 = vpow.pop %v991
      %v993 = vmul.f32 %v965, 1.442695
      %v994 = vpow.pop %v993
      %v995 = vmul.f32 %v966, 1.442695
      %v996 = vpow.pop %v995
      %v997 = vmul.f32 %v967, 1.442695
      %v998 = vpow.pop %v997
      %v999 = vmul.f32 %v968, 1.442695
      %v1000 = vpow.pop %v999
      %v1002 = vsel %vm531, 1.0, 0
      %v1005 = vsel %vm531, %v970, 0
      %v1008 = vsel %vm531, %v972, 0
      %v1011 = vsel %vm531, %v974, 0
      %v1014 = vsel %vm531, %v976, 0
      %v1017 = vsel %vm531, %v978, 0
      %v1020 = vsel %vm531, %v980, 0
      %v1023 = vsel %vm531, %v982, 0
      %v1026 = vsel %vm531, %v984, 0
      %v1029 = vsel %vm531, %v986, 0
      %v1032 = vsel %vm531, %v988, 0
      %v1035 = vsel %vm531, %v990, 0
      %v1038 = vsel %vm531, %v992, 0
      %v1041 = vsel %vm531, %v994, 0
      %v1044 = vsel %vm531, %v996, 0
      %v1047 = vsel %vm531, %v998, 0
      %v1050 = vsel %vm531, %v1000, 0
      %1052 = vmatprep.subr.mxu0 0.0
      %1053 = vmatpush1.xpose.msra.mxu0 %v1005
      %1054 = vmatprep.subr.mxu0 0.0
      %1055 = vmatpush1.xpose.msra.mxu0 %v1008
      %1056 = vmatprep.subr.mxu0 0.0
      %1057 = vmatpush1.xpose.msra.mxu0 %v1011
      %1058 = vmatprep.subr.mxu0 0.0
      %1059 = vmatpush1.xpose.msra.mxu0 %v1014
      %1060 = vmatprep.subr.mxu0 0.0
      %1061 = vmatpush1.xpose.msra.mxu0 %v1017
      %1062 = vmatprep.subr.mxu0 0.0
      %1063 = vmatpush1.xpose.msra.mxu0 %v1020
      %1064 = vmatprep.subr.mxu0 0.0
      %1065 = vmatpush1.xpose.msra.mxu0 %v1023
      %1066 = vmatprep.subr.mxu0 0.0
      %1067 = vmatpush1.xpose.msra.mxu0 %v1026
      %1068 = vmatprep.subr.mxu0 0.0
      %1069 = vmatpush1.xpose.msra.mxu0 %v1029
      %1070 = vmatprep.subr.mxu0 0.0
      %1071 = vmatpush1.xpose.msra.mxu0 %v1032
      %1072 = vmatprep.subr.mxu0 0.0
      %1073 = vmatpush1.xpose.msra.mxu0 %v1035
      %1074 = vmatprep.subr.mxu0 0.0
      %1075 = vmatpush1.xpose.msra.mxu0 %v1038
      %1076 = vmatprep.subr.mxu0 0.0
      %1077 = vmatpush1.xpose.msra.mxu0 %v1041
      %1078 = vmatprep.subr.mxu0 0.0
      %1079 = vmatpush1.xpose.msra.mxu0 %v1044
      %1080 = vmatprep.subr.mxu0 0.0
      %1081 = vmatpush1.xpose.msra.mxu0 %v1047
      %1082 = vmatprep.subr.mxu0 0.0
      %1083 = vmatpush1.xpose.msra.mxu0 %v1050
      %1084 = vmatprep.subr.mxu0 0.0
      %1085 = vmatpush1.xpose.msra.mxu0 0.0
      %1086 = vmatprep.subr.mxu0 0.0
      %1087 = vmatpush1.xpose.msra.mxu0 0.0
      %1088 = vmatprep.subr.mxu0 0.0
      %1089 = vmatpush1.xpose.msra.mxu0 0.0
      %1090 = vmatprep.subr.mxu0 0.0
      %1091 = vmatpush1.xpose.msra.mxu0 0.0
      %1092 = vmatprep.subr.mxu0 0.0
      %1093 = vmatpush1.xpose.msra.mxu0 0.0
      %1094 = vmatprep.subr.mxu0 0.0
      %1095 = vmatpush1.xpose.msra.mxu0 0.0
      %1096 = vmatprep.subr.mxu0 0.0
      %1097 = vmatpush1.xpose.msra.mxu0 0.0
      %1098 = vmatprep.subr.mxu0 0.0
      %1099 = vmatpush1.xpose.msra.mxu0 0.0
      %1100 = vmatprep.subr.mxu0 0.0
      %1101 = vmatpush1.xpose.msra.mxu0 0.0
      %1102 = vmatprep.subr.mxu0 0.0
      %1103 = vmatpush1.xpose.msra.mxu0 0.0
      %1104 = vmatprep.subr.mxu0 0.0
      %1105 = vmatpush1.xpose.msra.mxu0 0.0
      %1106 = vmatprep.subr.mxu0 0.0
      %1107 = vmatpush1.xpose.msra.mxu0 0.0
      %1108 = vmatprep.subr.mxu0 0.0
      %1109 = vmatpush1.xpose.msra.mxu0 0.0
      %1110 = vmatprep.subr.mxu0 0.0
      %1111 = vmatpush1.xpose.msra.mxu0 0.0
      %1112 = vmatprep.subr.mxu0 0.0
      %1113 = vmatpush1.xpose.msra.mxu0 0.0
      %1114 = vmatprep.subr.mxu0 0.0
      %1115 = vmatpush1.xpose.msra.mxu0 0.0
      %1116 = vmatprep.mubr.f32.mxu0 0.0
      %1117 = vmatmul.mubr.f32.gmra.mrb[0].mxu0 %v1002
      %v1118 = vpop.f32.mrb[0].mxu0
      %v1119 = vadd.f32 0.0, %v1118
      %v1120 = vpop.f32.mrb[0].mxu0
      %1121 = vdwg.mxu0
      %1122 = vmatprep.subr.mxu0 %v892
      %1123 = vmatpush1.xpose.msra.mxu0 %v890
      %1124 = vmatprep.subr.mxu0 %v896
      %1125 = vmatpush1.xpose.msra.mxu0 %v894
      %1126 = vmatprep.subr.mxu0 %v900
      %1127 = vmatpush1.xpose.msra.mxu0 %v898
      %1128 = vmatprep.subr.mxu0 %v904
      %1129 = vmatpush1.xpose.msra.mxu0 %v902
      %1130 = vmatprep.subr.mxu0 %v908
      %1131 = vmatpush1.xpose.msra.mxu0 %v906
      %1132 = vmatprep.subr.mxu0 %v912
      %1133 = vmatpush1.xpose.msra.mxu0 %v910
      %1134 = vmatprep.subr.mxu0 %v916
      %1135 = vmatpush1.xpose.msra.mxu0 %v914
      %1136 = vmatprep.subr.mxu0 %v920
      %1137 = vmatpush1.xpose.msra.mxu0 %v918
      %1138 = vmatprep.subr.mxu0 %v924
      %1139 = vmatpush1.xpose.msra.mxu0 %v922
      %1140 = vmatprep.subr.mxu0 %v928
      %1141 = vmatpush1.xpose.msra.mxu0 %v926
      %1142 = vmatprep.subr.mxu0 %v932
      %1143 = vmatpush1.xpose.msra.mxu0 %v930
      %1144 = vmatprep.subr.mxu0 %v936
      %1145 = vmatpush1.xpose.msra.mxu0 %v934
      %1146 = vmatprep.subr.mxu0 %v940
      %1147 = vmatpush1.xpose.msra.mxu0 %v938
      %1148 = vmatprep.subr.mxu0 %v944
      %1149 = vmatpush1.xpose.msra.mxu0 %v942
      %1150 = vmatprep.subr.mxu0 %v948
      %1151 = vmatpush1.xpose.msra.mxu0 %v946
      %1152 = vmatprep.subr.mxu0 %v952
      %1153 = vmatpush1.xpose.msra.mxu0 %v950
      %1154 = vmatprep.subr.mxu0 0.0
      %1155 = vmatpush1.xpose.msra.mxu0 0.0
      %1156 = vmatprep.subr.mxu0 0.0
      %1157 = vmatpush1.xpose.msra.mxu0 0.0
      %1158 = vmatprep.subr.mxu0 0.0
      %1159 = vmatpush1.xpose.msra.mxu0 0.0
      %1160 = vmatprep.subr.mxu0 0.0
      %1161 = vmatpush1.xpose.msra.mxu0 0.0
      %1162 = vmatprep.subr.mxu0 0.0
      %1163 = vmatpush1.xpose.msra.mxu0 0.0
      %1164 = vmatprep.subr.mxu0 0.0
      %1165 = vmatpush1.xpose.msra.mxu0 0.0
      %1166 = vmatprep.subr.mxu0 0.0
      %1167 = vmatpush1.xpose.msra.mxu0 0.0
      %1168 = vmatprep.subr.mxu0 0.0
      %1169 = vmatpush1.xpose.msra.mxu0 0.0
      %1170 = vmatprep.subr.mxu0 0.0
      %1171 = vmatpush1.xpose.msra.mxu0 0.0
      %1172 = vmatprep.subr.mxu0 0.0
      %1173 = vmatpush1.xpose.msra.mxu0 0.0
      %1174 = vmatprep.subr.mxu0 0.0
      %1175 = vmatpush1.xpose.msra.mxu0 0.0
      %1176 = vmatprep.subr.mxu0 0.0
      %1177 = vmatpush1.xpose.msra.mxu0 0.0
      %1178 = vmatprep.subr.mxu0 0.0
      %1179 = vmatpush1.xpose.msra.mxu0 0.0
      %1180 = vmatprep.subr.mxu0 0.0
      %1181 = vmatpush1.xpose.msra.mxu0 0.0
      %1182 = vmatprep.subr.mxu0 0.0
      %1183 = vmatpush1.xpose.msra.mxu0 0.0
      %1184 = vmatprep.subr.mxu0 0.0
      %1185 = vmatpush1.xpose.msra.mxu0 0.0
      %1186 = vmatprep.mubr.f32.mxu0 1.0
      %1187 = vmatmul.mubr.f32.gmra.mrb[0].mxu0 1.0
      %v1188 = vpop.f32.mrb[0].mxu0
      %v1189 = vadd.f32 %v1119, %v1188
      %v1190 = vpop.f32.mrb[0].mxu0
      %1191 = vdwg.mxu0
      %v1193 = vsel %vm531, %v419, 0
      %v1196 = vsel %vm531, %v420, 0
      %v1199 = vsel %vm531, %v421, 0
      %v1202 = vsel %vm531, %v422, 0
      %v1205 = vsel %vm531, %v423, 0
      %v1208 = vsel %vm531, %v424, 0
      %v1211 = vsel %vm531, %v425, 0
      %v1214 = vsel %vm531, %v426, 0
      %v1217 = vsel %vm531, %v427, 0
      %v1220 = vsel %vm531, %v428, 0
      %v1223 = vsel %vm531, %v429, 0
      %v1226 = vsel %vm531, %v430, 0
      %v1229 = vsel %vm531, %v431, 0
      %v1232 = vsel %vm531, %v432, 0
      %v1235 = vsel %vm531, %v433, 0
      %v1238 = vsel %vm531, %v434, 0
      %1240 = vmatprep.subr.mxu0 %v582
      %1241 = vmatpush1.msra.mxu0 %v580
      %1242 = vmatprep.subr.mxu0 0.0
      %1243 = vmatpush1.msra.mxu0 0.0
      %1244 = vmatprep.subr.mxu0 0.0
      %1245 = vmatpush1.msra.mxu0 0.0
      %1246 = vmatprep.subr.mxu0 0.0
      %1247 = vmatpush1.msra.mxu0 0.0
      %1248 = vmatprep.subr.mxu0 0.0
      %1249 = vmatpush1.msra.mxu0 0.0
      %1250 = vmatprep.subr.mxu0 0.0
      %1251 = vmatpush1.msra.mxu0 0.0
      %1252 = vmatprep.subr.mxu0 0.0
      %1253 = vmatpush1.msra.mxu0 0.0
      %1254 = vmatprep.subr.mxu0 0.0
      %1255 = vmatpush1.msra.mxu0 0.0
      %1256 = vmatprep.subr.mxu0 0.0
      %1257 = vmatpush1.msra.mxu0 0.0
      %1258 = vmatprep.subr.mxu0 0.0
      %1259 = vmatpush1.msra.mxu0 0.0
      %1260 = vmatprep.subr.mxu0 0.0
      %1261 = vmatpush1.msra.mxu0 0.0
      %1262 = vmatprep.subr.mxu0 0.0
      %1263 = vmatpush1.msra.mxu0 0.0
      %1264 = vmatprep.subr.mxu0 0.0
      %1265 = vmatpush1.msra.mxu0 0.0
      %1266 = vmatprep.subr.mxu0 0.0
      %1267 = vmatpush1.msra.mxu0 0.0
      %1268 = vmatprep.subr.mxu0 0.0
      %1269 = vmatpush1.msra.mxu0 0.0
      %1270 = vmatprep.subr.mxu0 0.0
      %1271 = vmatpush1.msra.mxu0 0.0
      %1272 = vmatprep.subr.mxu0 0.0
      %1273 = vmatpush1.msra.mxu0 0.0
      %1274 = vmatprep.subr.mxu0 0.0
      %1275 = vmatpush1.msra.mxu0 0.0
      %1276 = vmatprep.subr.mxu0 0.0
      %1277 = vmatpush1.msra.mxu0 0.0
      %1278 = vmatprep.subr.mxu0 0.0
      %1279 = vmatpush1.msra.mxu0 0.0
      %1280 = vmatprep.subr.mxu0 0.0
      %1281 = vmatpush1.msra.mxu0 0.0
      %1282 = vmatprep.subr.mxu0 0.0
      %1283 = vmatpush1.msra.mxu0 0.0
      %1284 = vmatprep.subr.mxu0 0.0
      %1285 = vmatpush1.msra.mxu0 0.0
      %1286 = vmatprep.subr.mxu0 0.0
      %1287 = vmatpush1.msra.mxu0 0.0
      %1288 = vmatprep.subr.mxu0 0.0
      %1289 = vmatpush1.msra.mxu0 0.0
      %1290 = vmatprep.subr.mxu0 0.0
      %1291 = vmatpush1.msra.mxu0 0.0
      %1292 = vmatprep.subr.mxu0 0.0
      %1293 = vmatpush1.msra.mxu0 0.0
      %1294 = vmatprep.subr.mxu0 0.0
      %1295 = vmatpush1.msra.mxu0 0.0
      %1296 = vmatprep.subr.mxu0 0.0
      %1297 = vmatpush1.msra.mxu0 0.0
      %1298 = vmatprep.subr.mxu0 0.0
      %1299 = vmatpush1.msra.mxu0 0.0
      %1300 = vmatprep.subr.mxu0 0.0
      %1301 = vmatpush1.msra.mxu0 0.0
      %1302 = vmatprep.subr.mxu0 0.0
      %1303 = vmatpush1.msra.mxu0 0.0
      %1304 = vmatprep.mubr.f32.mxu0 0.0
      %1305 = vmatmul.mubr.f32.gmra.mrb[0].mxu0 %v1193
      %v1306 = vpop.f32.mrb[0].mxu0
      %v1307 = vadd.f32 0.0, %v1306
      %v1308 = vpop.f32.mrb[0].mxu0
      %v1309 = vadd.f32 0.0, %v1308
      %1310 = vmatprep.mubr.f32.mxu0 0.0
      %1311 = vmatmul.mubr.f32.gmra.mrb[0].mxu0 %v1196
      %v1312 = vpop.f32.mrb[0].mxu0
      %v1313 = vadd.f32 0.0, %v1312
      %v1314 = vpop.f32.mrb[0].mxu0
      %v1315 = vadd.f32 0.0, %v1314
      %1316 = vmatprep.mubr.f32.mxu0 0.0
      %1317 = vmatmul.mubr.f32.gmra.mrb[0].mxu0 %v1199
      %v1318 = vpop.f32.mrb[0].mxu0
      %v1319 = vadd.f32 0.0, %v1318
      %v1320 = vpop.f32.mrb[0].mxu0
      %v1321 = vadd.f32 0.0, %v1320
      %1322 = vmatprep.mubr.f32.mxu0 0.0
      %1323 = vmatmul.mubr.f32.gmra.mrb[0].mxu0 %v1202
      %v1324 = vpop.f32.mrb[0].mxu0
      %v1325 = vadd.f32 0.0, %v1324
      %v1326 = vpop.f32.mrb[0].mxu0
      %v1327 = vadd.f32 0.0, %v1326
      %1328 = vmatprep.mubr.f32.mxu0 0.0
      %1329 = vmatmul.mubr.f32.gmra.mrb[0].mxu0 %v1205
      %v1330 = vpop.f32.mrb[0].mxu0
      %v1331 = vadd.f32 0.0, %v1330
      %v1332 = vpop.f32.mrb[0].mxu0
      %v1333 = vadd.f32 0.0, %v1332
      %1334 = vmatprep.mubr.f32.mxu0 0.0
      %1335 = vmatmul.mubr.f32.gmra.mrb[0].mxu0 %v1208
      %v1336 = vpop.f32.mrb[0].mxu0
      %v1337 = vadd.f32 0.0, %v1336
      %v1338 = vpop.f32.mrb[0].mxu0
      %v1339 = vadd.f32 0.0, %v1338
      %1340 = vmatprep.mubr.f32.mxu0 0.0
      %1341 = vmatmul.mubr.f32.gmra.mrb[0].mxu0 %v1211
      %v1342 = vpop.f32.mrb[0].mxu0
      %v1343 = vadd.f32 0.0, %v1342
      %v1344 = vpop.f32.mrb[0].mxu0
      %v1345 = vadd.f32 0.0, %v1344
      %1346 = vmatprep.mubr.f32.mxu0 0.0
      %1347 = vmatmul.mubr.f32.gmra.mrb[0].mxu0 %v1214
      %v1348 = vpop.f32.mrb[0].mxu0
      %v1349 = vadd.f32 0.0, %v1348
      %v1350 = vpop.f32.mrb[0].mxu0
      %v1351 = vadd.f32 0.0, %v1350
      %1352 = vmatprep.mubr.f32.mxu0 0.0
      %1353 = vmatmul.mubr.f32.gmra.mrb[0].mxu0 %v1217
      %v1354 = vpop.f32.mrb[0].mxu0
      %v1355 = vadd.f32 0.0, %v1354
      %v1356 = vpop.f32.mrb[0].mxu0
      %v1357 = vadd.f32 0.0, %v1356
      %1358 = vmatprep.mubr.f32.mxu0 0.0
      %1359 = vmatmul.mubr.f32.gmra.mrb[0].mxu0 %v1220
      %v1360 = vpop.f32.mrb[0].mxu0
      %v1361 = vadd.f32 0.0, %v1360
      %v1362 = vpop.f32.mrb[0].mxu0
      %v1363 = vadd.f32 0.0, %v1362
      %1364 = vmatprep.mubr.f32.mxu0 0.0
      %1365 = vmatmul.mubr.f32.gmra.mrb[0].mxu0 %v1223
      %v1366 = vpop.f32.mrb[0].mxu0
      %v1367 = vadd.f32 0.0, %v1366
      %v1368 = vpop.f32.mrb[0].mxu0
      %v1369 = vadd.f32 0.0, %v1368
      %1370 = vmatprep.mubr.f32.mxu0 0.0
      %1371 = vmatmul.mubr.f32.gmra.mrb[0].mxu0 %v1226
      %v1372 = vpop.f32.mrb[0].mxu0
      %v1373 = vadd.f32 0.0, %v1372
      %v1374 = vpop.f32.mrb[0].mxu0
      %v1375 = vadd.f32 0.0, %v1374
      %1376 = vmatprep.mubr.f32.mxu0 0.0
      %1377 = vmatmul.mubr.f32.gmra.mrb[0].mxu0 %v1229
      %v1378 = vpop.f32.mrb[0].mxu0
      %v1379 = vadd.f32 0.0, %v1378
      %v1380 = vpop.f32.mrb[0].mxu0
      %v1381 = vadd.f32 0.0, %v1380
      %1382 = vmatprep.mubr.f32.mxu0 0.0
      %1383 = vmatmul.mubr.f32.gmra.mrb[0].mxu0 %v1232
      %v1384 = vpop.f32.mrb[0].mxu0
      %v1385 = vadd.f32 0.0, %v1384
      %v1386 = vpop.f32.mrb[0].mxu0
      %v1387 = vadd.f32 0.0, %v1386
      %1388 = vmatprep.mubr.f32.mxu0 0.0
      %1389 = vmatmul.mubr.f32.gmra.mrb[0].mxu0 %v1235
      %v1390 = vpop.f32.mrb[0].mxu0
      %v1391 = vadd.f32 0.0, %v1390
      %v1392 = vpop.f32.mrb[0].mxu0
      %v1393 = vadd.f32 0.0, %v1392
      %1394 = vmatprep.mubr.f32.mxu0 0.0
      %1395 = vmatmul.mubr.f32.gmra.mrb[0].mxu0 %v1238
      %v1396 = vpop.f32.mrb[0].mxu0
      %v1397 = vadd.f32 0.0, %v1396
      %v1398 = vpop.f32.mrb[0].mxu0
      %v1399 = vadd.f32 0.0, %v1398
      %1400 = vdwg.mxu0
      %v1402 = vsel %vm531, %v455, 0
      %v1405 = vsel %vm531, %v456, 0
      %v1408 = vsel %vm531, %v457, 0
      %v1411 = vsel %vm531, %v458, 0
      %v1414 = vsel %vm531, %v459, 0
      %v1417 = vsel %vm531, %v460, 0
      %v1420 = vsel %vm531, %v461, 0
      %v1423 = vsel %vm531, %v462, 0
      %v1426 = vsel %vm531, %v463, 0
      %v1429 = vsel %vm531, %v464, 0
      %v1432 = vsel %vm531, %v465, 0
      %v1435 = vsel %vm531, %v466, 0
      %v1438 = vsel %vm531, %v467, 0
      %v1441 = vsel %vm531, %v468, 0
      %v1444 = vsel %vm531, %v469, 0
      %v1447 = vsel %vm531, %v470, 0
      %1449 = vmatprep.subr.mxu0 0.0
      %1450 = vmatpush1.xpose.msra.mxu0 %v1005
      %1451 = vmatprep.subr.mxu0 0.0
      %1452 = vmatpush1.xpose.msra.mxu0 %v1008
      %1453 = vmatprep.subr.mxu0 0.0
      %1454 = vmatpush1.xpose.msra.mxu0 %v1011
      %1455 = vmatprep.subr.mxu0 0.0
      %1456 = vmatpush1.xpose.msra.mxu0 %v1014
      %1457 = vmatprep.subr.mxu0 0.0
      %1458 = vmatpush1.xpose.msra.mxu0 %v1017
      %1459 = vmatprep.subr.mxu0 0.0
      %1460 = vmatpush1.xpose.msra.mxu0 %v1020
      %1461 = vmatprep.subr.mxu0 0.0
      %1462 = vmatpush1.xpose.msra.mxu0 %v1023
      %1463 = vmatprep.subr.mxu0 0.0
      %1464 = vmatpush1.xpose.msra.mxu0 %v1026
      %1465 = vmatprep.subr.mxu0 0.0
      %1466 = vmatpush1.xpose.msra.mxu0 %v1029
      %1467 = vmatprep.subr.mxu0 0.0
      %1468 = vmatpush1.xpose.msra.mxu0 %v1032
      %1469 = vmatprep.subr.mxu0 0.0
      %1470 = vmatpush1.xpose.msra.mxu0 %v1035
      %1471 = vmatprep.subr.mxu0 0.0
      %1472 = vmatpush1.xpose.msra.mxu0 %v1038
      %1473 = vmatprep.subr.mxu0 0.0
      %1474 = vmatpush1.xpose.msra.mxu0 %v1041
      %1475 = vmatprep.subr.mxu0 0.0
      %1476 = vmatpush1.xpose.msra.mxu0 %v1044
      %1477 = vmatprep.subr.mxu0 0.0
      %1478 = vmatpush1.xpose.msra.mxu0 %v1047
      %1479 = vmatprep.subr.mxu0 0.0
      %1480 = vmatpush1.xpose.msra.mxu0 %v1050
      %1481 = vmatprep.subr.mxu0 0.0
      %1482 = vmatpush1.xpose.msra.mxu0 0.0
      %1483 = vmatprep.subr.mxu0 0.0
      %1484 = vmatpush1.xpose.msra.mxu0 0.0
      %1485 = vmatprep.subr.mxu0 0.0
      %1486 = vmatpush1.xpose.msra.mxu0 0.0
      %1487 = vmatprep.subr.mxu0 0.0
      %1488 = vmatpush1.xpose.msra.mxu0 0.0
      %1489 = vmatprep.subr.mxu0 0.0
      %1490 = vmatpush1.xpose.msra.mxu0 0.0
      %1491 = vmatprep.subr.mxu0 0.0
      %1492 = vmatpush1.xpose.msra.mxu0 0.0
      %1493 = vmatprep.subr.mxu0 0.0
      %1494 = vmatpush1.xpose.msra.mxu0 0.0
      %1495 = vmatprep.subr.mxu0 0.0
      %1496 = vmatpush1.xpose.msra.mxu0 0.0
      %1497 = vmatprep.subr.mxu0 0.0
      %1498 = vmatpush1.xpose.msra.mxu0 0.0
      %1499 = vmatprep.subr.mxu0 0.0
      %1500 = vmatpush1.xpose.msra.mxu0 0.0
      %1501 = vmatprep.subr.mxu0 0.0
      %1502 = vmatpush1.xpose.msra.mxu0 0.0
      %1503 = vmatprep.subr.mxu0 0.0
      %1504 = vmatpush1.xpose.msra.mxu0 0.0
      %1505 = vmatprep.subr.mxu0 0.0
      %1506 = vmatpush1.xpose.msra.mxu0 0.0
      %1507 = vmatprep.subr.mxu0 0.0
      %1508 = vmatpush1.xpose.msra.mxu0 0.0
      %1509 = vmatprep.subr.mxu0 0.0
      %1510 = vmatpush1.xpose.msra.mxu0 0.0
      %1511 = vmatprep.subr.mxu0 0.0
      %1512 = vmatpush1.xpose.msra.mxu0 0.0
      %1513 = vmatprep.mubr.f32.mxu0 0.0
      %1514 = vmatmul.mubr.f32.gmra.mrb[0].mxu0 %v1402
      %v1515 = vpop.f32.mrb[0].mxu0
      %v1516 = vadd.f32 0.0, %v1515
      %v1517 = vpop.f32.mrb[0].mxu0
      %1518 = vmatprep.mubr.f32.mxu0 0.0
      %1519 = vmatmul.mubr.f32.gmra.mrb[0].mxu0 %v1405
      %v1520 = vpop.f32.mrb[0].mxu0
      %v1521 = vadd.f32 0.0, %v1520
      %v1522 = vpop.f32.mrb[0].mxu0
      %1523 = vmatprep.mubr.f32.mxu0 0.0
      %1524 = vmatmul.mubr.f32.gmra.mrb[0].mxu0 %v1408
      %v1525 = vpop.f32.mrb[0].mxu0
      %v1526 = vadd.f32 0.0, %v1525
      %v1527 = vpop.f32.mrb[0].mxu0
      %1528 = vmatprep.mubr.f32.mxu0 0.0
      %1529 = vmatmul.mubr.f32.gmra.mrb[0].mxu0 %v1411
      %v1530 = vpop.f32.mrb[0].mxu0
      %v1531 = vadd.f32 0.0, %v1530
      %v1532 = vpop.f32.mrb[0].mxu0
      %1533 = vmatprep.mubr.f32.mxu0 0.0
      %1534 = vmatmul.mubr.f32.gmra.mrb[0].mxu0 %v1414
      %v1535 = vpop.f32.mrb[0].mxu0
      %v1536 = vadd.f32 0.0, %v1535
      %v1537 = vpop.f32.mrb[0].mxu0
      %1538 = vmatprep.mubr.f32.mxu0 0.0
      %1539 = vmatmul.mubr.f32.gmra.mrb[0].mxu0 %v1417
      %v1540 = vpop.f32.mrb[0].mxu0
      %v1541 = vadd.f32 0.0, %v1540
      %v1542 = vpop.f32.mrb[0].mxu0
      %1543 = vmatprep.mubr.f32.mxu0 0.0
      %1544 = vmatmul.mubr.f32.gmra.mrb[0].mxu0 %v1420
      %v1545 = vpop.f32.mrb[0].mxu0
      %v1546 = vadd.f32 0.0, %v1545
      %v1547 = vpop.f32.mrb[0].mxu0
      %1548 = vmatprep.mubr.f32.mxu0 0.0
      %1549 = vmatmul.mubr.f32.gmra.mrb[0].mxu0 %v1423
      %v1550 = vpop.f32.mrb[0].mxu0
      %v1551 = vadd.f32 0.0, %v1550
      %v1552 = vpop.f32.mrb[0].mxu0
      %1553 = vmatprep.mubr.f32.mxu0 0.0
      %1554 = vmatmul.mubr.f32.gmra.mrb[0].mxu0 %v1426
      %v1555 = vpop.f32.mrb[0].mxu0
      %v1556 = vadd.f32 0.0, %v1555
      %v1557 = vpop.f32.mrb[0].mxu0
      %1558 = vmatprep.mubr.f32.mxu0 0.0
      %1559 = vmatmul.mubr.f32.gmra.mrb[0].mxu0 %v1429
      %v1560 = vpop.f32.mrb[0].mxu0
      %v1561 = vadd.f32 0.0, %v1560
      %v1562 = vpop.f32.mrb[0].mxu0
      %1563 = vmatprep.mubr.f32.mxu0 0.0
      %1564 = vmatmul.mubr.f32.gmra.mrb[0].mxu0 %v1432
      %v1565 = vpop.f32.mrb[0].mxu0
      %v1566 = vadd.f32 0.0, %v1565
      %v1567 = vpop.f32.mrb[0].mxu0
      %1568 = vmatprep.mubr.f32.mxu0 0.0
      %1569 = vmatmul.mubr.f32.gmra.mrb[0].mxu0 %v1435
      %v1570 = vpop.f32.mrb[0].mxu0
      %v1571 = vadd.f32 0.0, %v1570
      %v1572 = vpop.f32.mrb[0].mxu0
      %1573 = vmatprep.mubr.f32.mxu0 0.0
      %1574 = vmatmul.mubr.f32.gmra.mrb[0].mxu0 %v1438
      %v1575 = vpop.f32.mrb[0].mxu0
      %v1576 = vadd.f32 0.0, %v1575
      %v1577 = vpop.f32.mrb[0].mxu0
      %1578 = vmatprep.mubr.f32.mxu0 0.0
      %1579 = vmatmul.mubr.f32.gmra.mrb[0].mxu0 %v1441
      %v1580 = vpop.f32.mrb[0].mxu0
      %v1581 = vadd.f32 0.0, %v1580
      %v1582 = vpop.f32.mrb[0].mxu0
      %1583 = vmatprep.mubr.f32.mxu0 0.0
      %1584 = vmatmul.mubr.f32.gmra.mrb[0].mxu0 %v1444
      %v1585 = vpop.f32.mrb[0].mxu0
      %v1586 = vadd.f32 0.0, %v1585
      %v1587 = vpop.f32.mrb[0].mxu0
      %1588 = vmatprep.mubr.f32.mxu0 0.0
      %1589 = vmatmul.mubr.f32.gmra.mrb[0].mxu0 %v1447
      %v1590 = vpop.f32.mrb[0].mxu0
      %v1591 = vadd.f32 0.0, %v1590
      %v1592 = vpop.f32.mrb[0].mxu0
      %1593 = vdwg.mxu0
      %1594 = vmatprep.subr.mxu0 %v892
      %1595 = vmatpush1.xpose.msra.mxu0 %v890
      %1596 = vmatprep.subr.mxu0 %v896
      %1597 = vmatpush1.xpose.msra.mxu0 %v894
      %1598 = vmatprep.subr.mxu0 %v900
      %1599 = vmatpush1.xpose.msra.mxu0 %v898
      %1600 = vmatprep.subr.mxu0 %v904
      %1601 = vmatpush1.xpose.msra.mxu0 %v902
      %1602 = vmatprep.subr.mxu0 %v908
      %1603 = vmatpush1.xpose.msra.mxu0 %v906
      %1604 = vmatprep.subr.mxu0 %v912
      %1605 = vmatpush1.xpose.msra.mxu0 %v910
      %1606 = vmatprep.subr.mxu0 %v916
      %1607 = vmatpush1.xpose.msra.mxu0 %v914
      %1608 = vmatprep.subr.mxu0 %v920
      %1609 = vmatpush1.xpose.msra.mxu0 %v918
      %1610 = vmatprep.subr.mxu0 %v924
      %1611 = vmatpush1.xpose.msra.mxu0 %v922
      %1612 = vmatprep.subr.mxu0 %v928
      %1613 = vmatpush1.xpose.msra.mxu0 %v926
      %1614 = vmatprep.subr.mxu0 %v932
      %1615 = vmatpush1.xpose.msra.mxu0 %v930
      %1616 = vmatprep.subr.mxu0 %v936
      %1617 = vmatpush1.xpose.msra.mxu0 %v934
      %1618 = vmatprep.subr.mxu0 %v940
      %1619 = vmatpush1.xpose.msra.mxu0 %v938
      %1620 = vmatprep.subr.mxu0 %v944
      %1621 = vmatpush1.xpose.msra.mxu0 %v942
      %1622 = vmatprep.subr.mxu0 %v948
      %1623 = vmatpush1.xpose.msra.mxu0 %v946
      %1624 = vmatprep.subr.mxu0 %v952
      %1625 = vmatpush1.xpose.msra.mxu0 %v950
      %1626 = vmatprep.subr.mxu0 0.0
      %1627 = vmatpush1.xpose.msra.mxu0 0.0
      %1628 = vmatprep.subr.mxu0 0.0
      %1629 = vmatpush1.xpose.msra.mxu0 0.0
      %1630 = vmatprep.subr.mxu0 0.0
      %1631 = vmatpush1.xpose.msra.mxu0 0.0
      %1632 = vmatprep.subr.mxu0 0.0
      %1633 = vmatpush1.xpose.msra.mxu0 0.0
      %1634 = vmatprep.subr.mxu0 0.0
      %1635 = vmatpush1.xpose.msra.mxu0 0.0
      %1636 = vmatprep.subr.mxu0 0.0
      %1637 = vmatpush1.xpose.msra.mxu0 0.0
      %1638 = vmatprep.subr.mxu0 0.0
      %1639 = vmatpush1.xpose.msra.mxu0 0.0
      %1640 = vmatprep.subr.mxu0 0.0
      %1641 = vmatpush1.xpose.msra.mxu0 0.0
      %1642 = vmatprep.subr.mxu0 0.0
      %1643 = vmatpush1.xpose.msra.mxu0 0.0
      %1644 = vmatprep.subr.mxu0 0.0
      %1645 = vmatpush1.xpose.msra.mxu0 0.0
      %1646 = vmatprep.subr.mxu0 0.0
      %1647 = vmatpush1.xpose.msra.mxu0 0.0
      %1648 = vmatprep.subr.mxu0 0.0
      %1649 = vmatpush1.xpose.msra.mxu0 0.0
      %1650 = vmatprep.subr.mxu0 0.0
      %1651 = vmatpush1.xpose.msra.mxu0 0.0
      %1652 = vmatprep.subr.mxu0 0.0
      %1653 = vmatpush1.xpose.msra.mxu0 0.0
      %1654 = vmatprep.subr.mxu0 0.0
      %1655 = vmatpush1.xpose.msra.mxu0 0.0
      %1656 = vmatprep.subr.mxu0 0.0
      %1657 = vmatpush1.xpose.msra.mxu0 0.0
      %1658 = vmatprep.mubr.f32.mxu0 %v1309
      %1659 = vmatmul.mubr.f32.gmra.mrb[0].mxu0 %v1307
      %v1660 = vpop.f32.mrb[0].mxu0
      %v1661 = vadd.f32 %v1516, %v1660
      %v1662 = vpop.f32.mrb[0].mxu0
      %1663 = vmatprep.mubr.f32.mxu0 %v1315
      %1664 = vmatmul.mubr.f32.gmra.mrb[0].mxu0 %v1313
      %v1665 = vpop.f32.mrb[0].mxu0
      %v1666 = vadd.f32 %v1521, %v1665
      %v1667 = vpop.f32.mrb[0].mxu0
      %1668 = vmatprep.mubr.f32.mxu0 %v1321
      %1669 = vmatmul.mubr.f32.gmra.mrb[0].mxu0 %v1319
      %v1670 = vpop.f32.mrb[0].mxu0
      %v1671 = vadd.f32 %v1526, %v1670
      %v1672 = vpop.f32.mrb[0].mxu0
      %1673 = vmatprep.mubr.f32.mxu0 %v1327
      %1674 = vmatmul.mubr.f32.gmra.mrb[0].mxu0 %v1325
      %v1675 = vpop.f32.mrb[0].mxu0
      %v1676 = vadd.f32 %v1531, %v1675
      %v1677 = vpop.f32.mrb[0].mxu0
      %1678 = vmatprep.mubr.f32.mxu0 %v1333
      %1679 = vmatmul.mubr.f32.gmra.mrb[0].mxu0 %v1331
      %v1680 = vpop.f32.mrb[0].mxu0
      %v1681 = vadd.f32 %v1536, %v1680
      %v1682 = vpop.f32.mrb[0].mxu0
      %1683 = vmatprep.mubr.f32.mxu0 %v1339
      %1684 = vmatmul.mubr.f32.gmra.mrb[0].mxu0 %v1337
      %v1685 = vpop.f32.mrb[0].mxu0
      %v1686 = vadd.f32 %v1541, %v1685
      %v1687 = vpop.f32.mrb[0].mxu0
      %1688 = vmatprep.mubr.f32.mxu0 %v1345
      %1689 = vmatmul.mubr.f32.gmra.mrb[0].mxu0 %v1343
      %v1690 = vpop.f32.mrb[0].mxu0
      %v1691 = vadd.f32 %v1546, %v1690
      %v1692 = vpop.f32.mrb[0].mxu0
      %1693 = vmatprep.mubr.f32.mxu0 %v1351
      %1694 = vmatmul.mubr.f32.gmra.mrb[0].mxu0 %v1349
      %v1695 = vpop.f32.mrb[0].mxu0
      %v1696 = vadd.f32 %v1551, %v1695
      %v1697 = vpop.f32.mrb[0].mxu0
      %1698 = vmatprep.mubr.f32.mxu0 %v1357
      %1699 = vmatmul.mubr.f32.gmra.mrb[0].mxu0 %v1355
      %v1700 = vpop.f32.mrb[0].mxu0
      %v1701 = vadd.f32 %v1556, %v1700
      %v1702 = vpop.f32.mrb[0].mxu0
      %1703 = vmatprep.mubr.f32.mxu0 %v1363
      %1704 = vmatmul.mubr.f32.gmra.mrb[0].mxu0 %v1361
      %v1705 = vpop.f32.mrb[0].mxu0
      %v1706 = vadd.f32 %v1561, %v1705
      %v1707 = vpop.f32.mrb[0].mxu0
      %1708 = vmatprep.mubr.f32.mxu0 %v1369
      %1709 = vmatmul.mubr.f32.gmra.mrb[0].mxu0 %v1367
      %v1710 = vpop.f32.mrb[0].mxu0
      %v1711 = vadd.f32 %v1566, %v1710
      %v1712 = vpop.f32.mrb[0].mxu0
      %1713 = vmatprep.mubr.f32.mxu0 %v1375
      %1714 = vmatmul.mubr.f32.gmra.mrb[0].mxu0 %v1373
      %v1715 = vpop.f32.mrb[0].mxu0
      %v1716 = vadd.f32 %v1571, %v1715
      %v1717 = vpop.f32.mrb[0].mxu0
      %1718 = vmatprep.mubr.f32.mxu0 %v1381
      %1719 = vmatmul.mubr.f32.gmra.mrb[0].mxu0 %v1379
      %v1720 = vpop.f32.mrb[0].mxu0
      %v1721 = vadd.f32 %v1576, %v1720
      %v1722 = vpop.f32.mrb[0].mxu0
      %1723 = vmatprep.mubr.f32.mxu0 %v1387
      %1724 = vmatmul.mubr.f32.gmra.mrb[0].mxu0 %v1385
      %v1725 = vpop.f32.mrb[0].mxu0
      %v1726 = vadd.f32 %v1581, %v1725
      %v1727 = vpop.f32.mrb[0].mxu0
      %1728 = vmatprep.mubr.f32.mxu0 %v1393
      %1729 = vmatmul.mubr.f32.gmra.mrb[0].mxu0 %v1391
      %v1730 = vpop.f32.mrb[0].mxu0
      %v1731 = vadd.f32 %v1586, %v1730
      %v1732 = vpop.f32.mrb[0].mxu0
      %1733 = vmatprep.mubr.f32.mxu0 %v1399
      %1734 = vmatmul.mubr.f32.gmra.mrb[0].mxu0 %v1397
      %v1735 = vpop.f32.mrb[0].mxu0
      %v1736 = vadd.f32 %v1591, %v1735
      %v1737 = vpop.f32.mrb[0].mxu0
      %1738 = vdwg.mxu0
      %v1739 = vmul.f32 %v1661, %v471
      %v1740 = vmul.f32 %v1666, %v472
      %v1741 = vmul.f32 %v1671, %v473
      %v1742 = vmul.f32 %v1676, %v474
      %v1743 = vmul.f32 %v1681, %v475
      %v1744 = vmul.f32 %v1686, %v476
      %v1745 = vmul.f32 %v1691, %v477
      %v1746 = vmul.f32 %v1696, %v478
      %v1747 = vmul.f32 %v1701, %v479
      %v1748 = vmul.f32 %v1706, %v480
      %v1749 = vmul.f32 %v1711, %v481
      %v1750 = vmul.f32 %v1716, %v482
      %v1751 = vmul.f32 %v1721, %v483
      %v1752 = vmul.f32 %v1726, %v484
      %v1753 = vmul.f32 %v1731, %v485
      %v1754 = vmul.f32 %v1736, %v486
      %1755 = vmatprep.subr.mxu0 0.0
      %1756 = vmatpush1.msra.mxu0 %v1739
      %1757 = vmatprep.subr.mxu0 0.0
      %1758 = vmatpush1.msra.mxu0 %v1740
      %1759 = vmatprep.subr.mxu0 0.0
      %1760 = vmatpush1.msra.mxu0 %v1741
      %1761 = vmatprep.subr.mxu0 0.0
      %1762 = vmatpush1.msra.mxu0 %v1742
      %1763 = vmatprep.subr.mxu0 0.0
      %1764 = vmatpush1.msra.mxu0 %v1743
      %1765 = vmatprep.subr.mxu0 0.0
      %1766 = vmatpush1.msra.mxu0 %v1744
      %1767 = vmatprep.subr.mxu0 0.0
      %1768 = vmatpush1.msra.mxu0 %v1745
      %1769 = vmatprep.subr.mxu0 0.0
      %1770 = vmatpush1.msra.mxu0 %v1746
      %1771 = vmatprep.subr.mxu0 0.0
      %1772 = vmatpush1.msra.mxu0 %v1747
      %1773 = vmatprep.subr.mxu0 0.0
      %1774 = vmatpush1.msra.mxu0 %v1748
      %1775 = vmatprep.subr.mxu0 0.0
      %1776 = vmatpush1.msra.mxu0 %v1749
      %1777 = vmatprep.subr.mxu0 0.0
      %1778 = vmatpush1.msra.mxu0 %v1750
      %1779 = vmatprep.subr.mxu0 0.0
      %1780 = vmatpush1.msra.mxu0 %v1751
      %1781 = vmatprep.subr.mxu0 0.0
      %1782 = vmatpush1.msra.mxu0 %v1752
      %1783 = vmatprep.subr.mxu0 0.0
      %1784 = vmatpush1.msra.mxu0 %v1753
      %1785 = vmatprep.subr.mxu0 0.0
      %1786 = vmatpush1.msra.mxu0 %v1754
      %1787 = vmatprep.subr.mxu0 0.0
      %1788 = vmatpush1.msra.mxu0 0.0
      %1789 = vmatprep.subr.mxu0 0.0
      %1790 = vmatpush1.msra.mxu0 0.0
      %1791 = vmatprep.subr.mxu0 0.0
      %1792 = vmatpush1.msra.mxu0 0.0
      %1793 = vmatprep.subr.mxu0 0.0
      %1794 = vmatpush1.msra.mxu0 0.0
      %1795 = vmatprep.subr.mxu0 0.0
      %1796 = vmatpush1.msra.mxu0 0.0
      %1797 = vmatprep.subr.mxu0 0.0
      %1798 = vmatpush1.msra.mxu0 0.0
      %1799 = vmatprep.subr.mxu0 0.0
      %1800 = vmatpush1.msra.mxu0 0.0
      %1801 = vmatprep.subr.mxu0 0.0
      %1802 = vmatpush1.msra.mxu0 0.0
      %1803 = vmatprep.subr.mxu0 0.0
      %1804 = vmatpush1.msra.mxu0 0.0
      %1805 = vmatprep.subr.mxu0 0.0
      %1806 = vmatpush1.msra.mxu0 0.0
      %1807 = vmatprep.subr.mxu0 0.0
      %1808 = vmatpush1.msra.mxu0 0.0
      %1809 = vmatprep.subr.mxu0 0.0
      %1810 = vmatpush1.msra.mxu0 0.0
      %1811 = vmatprep.subr.mxu0 0.0
      %1812 = vmatpush1.msra.mxu0 0.0
      %1813 = vmatprep.subr.mxu0 0.0
      %1814 = vmatpush1.msra.mxu0 0.0
      %1815 = vmatprep.subr.mxu0 0.0
      %1816 = vmatpush1.msra.mxu0 0.0
      %1817 = vmatprep.subr.mxu0 0.0
      %1818 = vmatpush1.msra.mxu0 0.0
      %1819 = vmatprep.mubr.f32.mxu0 0.0
      %1820 = vmatmul.mubr.f32.gmra.mrb[0].mxu0 %v435
      %v1821 = vpop.f32.mrb[0].mxu0
      %v1822 = vadd.f32 0.0, %v1821
      %v1823 = vpop.f32.mrb[0].mxu0
      %1824 = vdwg.mxu0
      %v1825 = vrcp.pop %v1189
      %v1826 = vmul.f32 0.17677669, %v1825
      %v1827 = vlaneseq
      %v1828 = vshrl.u32 %v1827, 7
      %v1829 = vsub.s32 0, %v1828
      %v1830 = vrot.slane %v1826, %v1829
      %v1831 = vmul.f32 %v1822, %v1830
      %v1833 = vsel %vm531, %v387, 0
      %v1836 = vsel %vm531, %v388, 0
      %v1839 = vsel %vm531, %v389, 0
      %v1842 = vsel %vm531, %v390, 0
      %v1845 = vsel %vm531, %v391, 0
      %v1848 = vsel %vm531, %v392, 0
      %v1851 = vsel %vm531, %v393, 0
      %v1854 = vsel %vm531, %v394, 0
      %v1857 = vsel %vm531, %v395, 0
      %v1860 = vsel %vm531, %v396, 0
      %v1863 = vsel %vm531, %v397, 0
      %v1866 = vsel %vm531, %v398, 0
      %v1869 = vsel %vm531, %v399, 0
      %v1872 = vsel %vm531, %v400, 0
      %v1875 = vsel %vm531, %v401, 0
      %v1878 = vsel %vm531, %v402, 0
      %1880 = vmatprep.subr.mxu0 %v582
      %1881 = vmatpush1.msra.mxu0 %v580
      %1882 = vmatprep.subr.mxu0 0.0
      %1883 = vmatpush1.msra.mxu0 0.0
      %1884 = vmatprep.subr.mxu0 0.0
      %1885 = vmatpush1.msra.mxu0 0.0
      %1886 = vmatprep.subr.mxu0 0.0
      %1887 = vmatpush1.msra.mxu0 0.0
      %1888 = vmatprep.subr.mxu0 0.0
      %1889 = vmatpush1.msra.mxu0 0.0
      %1890 = vmatprep.subr.mxu0 0.0
      %1891 = vmatpush1.msra.mxu0 0.0
      %1892 = vmatprep.subr.mxu0 0.0
      %1893 = vmatpush1.msra.mxu0 0.0
      %1894 = vmatprep.subr.mxu0 0.0
      %1895 = vmatpush1.msra.mxu0 0.0
      %1896 = vmatprep.subr.mxu0 0.0
      %1897 = vmatpush1.msra.mxu0 0.0
      %1898 = vmatprep.subr.mxu0 0.0
      %1899 = vmatpush1.msra.mxu0 0.0
      %1900 = vmatprep.subr.mxu0 0.0
      %1901 = vmatpush1.msra.mxu0 0.0
      %1902 = vmatprep.subr.mxu0 0.0
      %1903 = vmatpush1.msra.mxu0 0.0
      %1904 = vmatprep.subr.mxu0 0.0
      %1905 = vmatpush1.msra.mxu0 0.0
      %1906 = vmatprep.subr.mxu0 0.0
      %1907 = vmatpush1.msra.mxu0 0.0
      %1908 = vmatprep.subr.mxu0 0.0
      %1909 = vmatpush1.msra.mxu0 0.0
      %1910 = vmatprep.subr.mxu0 0.0
      %1911 = vmatpush1.msra.mxu0 0.0
      %1912 = vmatprep.subr.mxu0 0.0
      %1913 = vmatpush1.msra.mxu0 0.0
      %1914 = vmatprep.subr.mxu0 0.0
      %1915 = vmatpush1.msra.mxu0 0.0
      %1916 = vmatprep.subr.mxu0 0.0
      %1917 = vmatpush1.msra.mxu0 0.0
      %1918 = vmatprep.subr.mxu0 0.0
      %1919 = vmatpush1.msra.mxu0 0.0
      %1920 = vmatprep.subr.mxu0 0.0
      %1921 = vmatpush1.msra.mxu0 0.0
      %1922 = vmatprep.subr.mxu0 0.0
      %1923 = vmatpush1.msra.mxu0 0.0
      %1924 = vmatprep.subr.mxu0 0.0
      %1925 = vmatpush1.msra.mxu0 0.0
      %1926 = vmatprep.subr.mxu0 0.0
      %1927 = vmatpush1.msra.mxu0 0.0
      %1928 = vmatprep.subr.mxu0 0.0
      %1929 = vmatpush1.msra.mxu0 0.0
      %1930 = vmatprep.subr.mxu0 0.0
      %1931 = vmatpush1.msra.mxu0 0.0
      %1932 = vmatprep.subr.mxu0 0.0
      %1933 = vmatpush1.msra.mxu0 0.0
      %1934 = vmatprep.subr.mxu0 0.0
      %1935 = vmatpush1.msra.mxu0 0.0
      %1936 = vmatprep.subr.mxu0 0.0
      %1937 = vmatpush1.msra.mxu0 0.0
      %1938 = vmatprep.subr.mxu0 0.0
      %1939 = vmatpush1.msra.mxu0 0.0
      %1940 = vmatprep.subr.mxu0 0.0
      %1941 = vmatpush1.msra.mxu0 0.0
      %1942 = vmatprep.subr.mxu0 0.0
      %1943 = vmatpush1.msra.mxu0 0.0
      %1944 = vmatprep.mubr.f32.mxu0 0.0
      %1945 = vmatmul.mubr.f32.gmra.mrb[0].mxu0 %v1833
      %v1946 = vpop.f32.mrb[0].mxu0
      %v1947 = vadd.f32 0.0, %v1946
      %v1948 = vpop.f32.mrb[0].mxu0
      %v1949 = vadd.f32 0.0, %v1948
      %1950 = vmatprep.mubr.f32.mxu0 0.0
      %1951 = vmatmul.mubr.f32.gmra.mrb[0].mxu0 %v1836
      %v1952 = vpop.f32.mrb[0].mxu0
      %v1953 = vadd.f32 0.0, %v1952
      %v1954 = vpop.f32.mrb[0].mxu0
      %v1955 = vadd.f32 0.0, %v1954
      %1956 = vmatprep.mubr.f32.mxu0 0.0
      %1957 = vmatmul.mubr.f32.gmra.mrb[0].mxu0 %v1839
      %v1958 = vpop.f32.mrb[0].mxu0
      %v1959 = vadd.f32 0.0, %v1958
      %v1960 = vpop.f32.mrb[0].mxu0
      %v1961 = vadd.f32 0.0, %v1960
      %1962 = vmatprep.mubr.f32.mxu0 0.0
      %1963 = vmatmul.mubr.f32.gmra.mrb[0].mxu0 %v1842
      %v1964 = vpop.f32.mrb[0].mxu0
      %v1965 = vadd.f32 0.0, %v1964
      %v1966 = vpop.f32.mrb[0].mxu0
      %v1967 = vadd.f32 0.0, %v1966
      %1968 = vmatprep.mubr.f32.mxu0 0.0
      %1969 = vmatmul.mubr.f32.gmra.mrb[0].mxu0 %v1845
      %v1970 = vpop.f32.mrb[0].mxu0
      %v1971 = vadd.f32 0.0, %v1970
      %v1972 = vpop.f32.mrb[0].mxu0
      %v1973 = vadd.f32 0.0, %v1972
      %1974 = vmatprep.mubr.f32.mxu0 0.0
      %1975 = vmatmul.mubr.f32.gmra.mrb[0].mxu0 %v1848
      %v1976 = vpop.f32.mrb[0].mxu0
      %v1977 = vadd.f32 0.0, %v1976
      %v1978 = vpop.f32.mrb[0].mxu0
      %v1979 = vadd.f32 0.0, %v1978
      %1980 = vmatprep.mubr.f32.mxu0 0.0
      %1981 = vmatmul.mubr.f32.gmra.mrb[0].mxu0 %v1851
      %v1982 = vpop.f32.mrb[0].mxu0
      %v1983 = vadd.f32 0.0, %v1982
      %v1984 = vpop.f32.mrb[0].mxu0
      %v1985 = vadd.f32 0.0, %v1984
      %1986 = vmatprep.mubr.f32.mxu0 0.0
      %1987 = vmatmul.mubr.f32.gmra.mrb[0].mxu0 %v1854
      %v1988 = vpop.f32.mrb[0].mxu0
      %v1989 = vadd.f32 0.0, %v1988
      %v1990 = vpop.f32.mrb[0].mxu0
      %v1991 = vadd.f32 0.0, %v1990
      %1992 = vmatprep.mubr.f32.mxu0 0.0
      %1993 = vmatmul.mubr.f32.gmra.mrb[0].mxu0 %v1857
      %v1994 = vpop.f32.mrb[0].mxu0
      %v1995 = vadd.f32 0.0, %v1994
      %v1996 = vpop.f32.mrb[0].mxu0
      %v1997 = vadd.f32 0.0, %v1996
      %1998 = vmatprep.mubr.f32.mxu0 0.0
      %1999 = vmatmul.mubr.f32.gmra.mrb[0].mxu0 %v1860
      %v2000 = vpop.f32.mrb[0].mxu0
      %v2001 = vadd.f32 0.0, %v2000
      %v2002 = vpop.f32.mrb[0].mxu0
      %v2003 = vadd.f32 0.0, %v2002
      %2004 = vmatprep.mubr.f32.mxu0 0.0
      %2005 = vmatmul.mubr.f32.gmra.mrb[0].mxu0 %v1863
      %v2006 = vpop.f32.mrb[0].mxu0
      %v2007 = vadd.f32 0.0, %v2006
      %v2008 = vpop.f32.mrb[0].mxu0
      %v2009 = vadd.f32 0.0, %v2008
      %2010 = vmatprep.mubr.f32.mxu0 0.0
      %2011 = vmatmul.mubr.f32.gmra.mrb[0].mxu0 %v1866
      %v2012 = vpop.f32.mrb[0].mxu0
      %v2013 = vadd.f32 0.0, %v2012
      %v2014 = vpop.f32.mrb[0].mxu0
      %v2015 = vadd.f32 0.0, %v2014
      %2016 = vmatprep.mubr.f32.mxu0 0.0
      %2017 = vmatmul.mubr.f32.gmra.mrb[0].mxu0 %v1869
      %v2018 = vpop.f32.mrb[0].mxu0
      %v2019 = vadd.f32 0.0, %v2018
      %v2020 = vpop.f32.mrb[0].mxu0
      %v2021 = vadd.f32 0.0, %v2020
      %2022 = vmatprep.mubr.f32.mxu0 0.0
      %2023 = vmatmul.mubr.f32.gmra.mrb[0].mxu0 %v1872
      %v2024 = vpop.f32.mrb[0].mxu0
      %v2025 = vadd.f32 0.0, %v2024
      %v2026 = vpop.f32.mrb[0].mxu0
      %v2027 = vadd.f32 0.0, %v2026
      %2028 = vmatprep.mubr.f32.mxu0 0.0
      %2029 = vmatmul.mubr.f32.gmra.mrb[0].mxu0 %v1875
      %v2030 = vpop.f32.mrb[0].mxu0
      %v2031 = vadd.f32 0.0, %v2030
      %v2032 = vpop.f32.mrb[0].mxu0
      %v2033 = vadd.f32 0.0, %v2032
      %2034 = vmatprep.mubr.f32.mxu0 0.0
      %2035 = vmatmul.mubr.f32.gmra.mrb[0].mxu0 %v1878
      %v2036 = vpop.f32.mrb[0].mxu0
      %v2037 = vadd.f32 0.0, %v2036
      %v2038 = vpop.f32.mrb[0].mxu0
      %v2039 = vadd.f32 0.0, %v2038
      %2040 = vdwg.mxu0
      %v2041 = vmax.f32 %v1947, %v1959
      %v2042 = vmax.f32 %v1953, %v1965
      %v2043 = vmax.f32 %v2041, %v2042
      %v2044 = vrot.slane %v2043, 4
      %v2045 = vmax.f32 %v2043, %v2044
      %v2046 = vrot.slane %v2045, 2
      %v2047 = vmax.f32 %v2045, %v2046
      %v2048 = vrot.slane %v2047, 1
      %v2049 = vmax.f32 %v2047, %v2048
      %v2050 = vmax.f32 %v1949, %v1961
      %v2051 = vmax.f32 %v1955, %v1967
      %v2052 = vmax.f32 %v2050, %v2051
      %v2053 = vrot.slane %v2052, 4
      %v2054 = vmax.f32 %v2052, %v2053
      %v2055 = vrot.slane %v2054, 2
      %v2056 = vmax.f32 %v2054, %v2055
      %v2057 = vrot.slane %v2056, 1
      %v2058 = vmax.f32 %v2056, %v2057
      %v2059 = vsub.f32 %v1947, %v2049
      %v2060 = vsub.f32 %v1949, %v2058
      %v2061 = vsub.f32 %v1953, %v2049
      %v2062 = vsub.f32 %v1955, %v2058
      %v2063 = vsub.f32 %v1959, %v2049
      %v2064 = vsub.f32 %v1961, %v2058
      %v2065 = vsub.f32 %v1965, %v2049
      %v2066 = vsub.f32 %v1967, %v2058
      %v2067 = vmul.f32 %v2059, 1.442695
      %v2068 = vpow.pop %v2067
      %v2069 = vmul.f32 %v2060, 1.442695
      %v2070 = vpow.pop %v2069
      %v2071 = vmul.f32 %v2061, 1.442695
      %v2072 = vpow.pop %v2071
      %v2073 = vmul.f32 %v2062, 1.442695
      %v2074 = vpow.pop %v2073
      %v2075 = vmul.f32 %v2063, 1.442695
      %v2076 = vpow.pop %v2075
      %v2077 = vmul.f32 %v2064, 1.442695
      %v2078 = vpow.pop %v2077
      %v2079 = vmul.f32 %v2065, 1.442695
      %v2080 = vpow.pop %v2079
      %v2081 = vmul.f32 %v2066, 1.442695
      %v2082 = vpow.pop %v2081
      %v2083 = vadd.f32 %v2068, %v2072
      %v2084 = vadd.f32 %v2083, %v2076
      %v2085 = vadd.f32 %v2084, %v2080
      %v2086 = vrot.slane %v2085, 4
      %v2087 = vadd.f32 %v2085, %v2086
      %v2088 = vrot.slane %v2087, 2
      %v2089 = vadd.f32 %v2087, %v2088
      %v2090 = vrot.slane %v2089, 1
      %v2091 = vadd.f32 %v2089, %v2090
      %v2092 = vadd.f32 %v2070, %v2074
      %v2093 = vadd.f32 %v2092, %v2078
      %v2094 = vadd.f32 %v2093, %v2082
      %v2095 = vrot.slane %v2094, 4
      %v2096 = vadd.f32 %v2094, %v2095
      %v2097 = vrot.slane %v2096, 2
      %v2098 = vadd.f32 %v2096, %v2097
      %v2099 = vrot.slane %v2098, 1
      %v2100 = vadd.f32 %v2098, %v2099
      %v2101 = vrcp.pop %v2091
      %v2102 = vmul.f32 1.0, %v2101
      %v2103 = vrcp.pop %v2100
      %v2104 = vmul.f32 1.0, %v2103
      %v2105 = vmul.f32 %v2068, %v2102
      %v2106 = vmul.f32 %v2070, %v2104
      %v2107 = vmul.f32 %v2072, %v2102
      %v2108 = vmul.f32 %v2074, %v2104
      %v2109 = vmul.f32 %v2076, %v2102
      %v2110 = vmul.f32 %v2078, %v2104
      %v2111 = vmul.f32 %v2080, %v2102
      %v2112 = vmul.f32 %v2082, %v2104
      %v2113 = vmax.f32 %v1971, %v1983
      %v2114 = vmax.f32 %v1977, %v1989
      %v2115 = vmax.f32 %v2113, %v2114
      %v2116 = vrot.slane %v2115, 4
      %v2117 = vmax.f32 %v2115, %v2116
      %v2118 = vrot.slane %v2117, 2
      %v2119 = vmax.f32 %v2117, %v2118
      %v2120 = vrot.slane %v2119, 1
      %v2121 = vmax.f32 %v2119, %v2120
      %v2122 = vmax.f32 %v1973, %v1985
      %v2123 = vmax.f32 %v1979, %v1991
      %v2124 = vmax.f32 %v2122, %v2123
      %v2125 = vrot.slane %v2124, 4
      %v2126 = vmax.f32 %v2124, %v2125
      %v2127 = vrot.slane %v2126, 2
      %v2128 = vmax.f32 %v2126, %v2127
      %v2129 = vrot.slane %v2128, 1
      %v2130 = vmax.f32 %v2128, %v2129
      %v2131 = vsub.f32 %v1971, %v2121
      %v2132 = vsub.f32 %v1973, %v2130
      %v2133 = vsub.f32 %v1977, %v2121
      %v2134 = vsub.f32 %v1979, %v2130
      %v2135 = vsub.f32 %v1983, %v2121
      %v2136 = vsub.f32 %v1985, %v2130
      %v2137 = vsub.f32 %v1989, %v2121
      %v2138 = vsub.f32 %v1991, %v2130
      %v2139 = vmul.f32 %v2131, 1.442695
      %v2140 = vpow.pop %v2139
      %v2141 = vmul.f32 %v2132, 1.442695
      %v2142 = vpow.pop %v2141
      %v2143 = vmul.f32 %v2133, 1.442695
      %v2144 = vpow.pop %v2143
      %v2145 = vmul.f32 %v2134, 1.442695
      %v2146 = vpow.pop %v2145
      %v2147 = vmul.f32 %v2135, 1.442695
      %v2148 = vpow.pop %v2147
      %v2149 = vmul.f32 %v2136, 1.442695
      %v2150 = vpow.pop %v2149
      %v2151 = vmul.f32 %v2137, 1.442695
      %v2152 = vpow.pop %v2151
      %v2153 = vmul.f32 %v2138, 1.442695
      %v2154 = vpow.pop %v2153
      %v2155 = vadd.f32 %v2140, %v2144
      %v2156 = vadd.f32 %v2155, %v2148
      %v2157 = vadd.f32 %v2156, %v2152
      %v2158 = vrot.slane %v2157, 4
      %v2159 = vadd.f32 %v2157, %v2158
      %v2160 = vrot.slane %v2159, 2
      %v2161 = vadd.f32 %v2159, %v2160
      %v2162 = vrot.slane %v2161, 1
      %v2163 = vadd.f32 %v2161, %v2162
      %v2164 = vadd.f32 %v2142, %v2146
      %v2165 = vadd.f32 %v2164, %v2150
      %v2166 = vadd.f32 %v2165, %v2154
      %v2167 = vrot.slane %v2166, 4
      %v2168 = vadd.f32 %v2166, %v2167
      %v2169 = vrot.slane %v2168, 2
      %v2170 = vadd.f32 %v2168, %v2169
      %v2171 = vrot.slane %v2170, 1
      %v2172 = vadd.f32 %v2170, %v2171
      %v2173 = vrcp.pop %v2163
      %v2174 = vmul.f32 1.0, %v2173
      %v2175 = vrcp.pop %v2172
      %v2176 = vmul.f32 1.0, %v2175
      %v2177 = vmul.f32 %v2140, %v2174
      %v2178 = vmul.f32 %v2142, %v2176
      %v2179 = vmul.f32 %v2144, %v2174
      %v2180 = vmul.f32 %v2146, %v2176
      %v2181 = vmul.f32 %v2148, %v2174
      %v2182 = vmul.f32 %v2150, %v2176
      %v2183 = vmul.f32 %v2152, %v2174
      %v2184 = vmul.f32 %v2154, %v2176
      %2186 = vrot.lane.b32.xlu0 %v1831, 96
      %v2187 = vpop.permute.xlu0 %2186
      %vm2188 = vcmask 261120
      %v2189 = vsel %vm2188, %v2187, 0
      %2191 = vmatprep.subr.mxu0 %v2178
      %2192 = vmatpush1.msra.mxu0 %v2177
      %2193 = vmatprep.subr.mxu0 %v2180
      %2194 = vmatpush1.msra.mxu0 %v2179
      %2195 = vmatprep.subr.mxu0 %v2182
      %2196 = vmatpush1.msra.mxu0 %v2181
      %2197 = vmatprep.subr.mxu0 %v2184
      %2198 = vmatpush1.msra.mxu0 %v2183
      %2199 = vmatprep.subr.mxu0 0.0
      %2200 = vmatpush1.msra.mxu0 0.0
      %2201 = vmatprep.subr.mxu0 0.0
      %2202 = vmatpush1.msra.mxu0 0.0
      %2203 = vmatprep.subr.mxu0 0.0
      %2204 = vmatpush1.msra.mxu0 0.0
      %2205 = vmatprep.subr.mxu0 0.0
      %2206 = vmatpush1.msra.mxu0 0.0
      %2207 = vmatprep.subr.mxu0 0.0
      %2208 = vmatpush1.msra.mxu0 0.0
      %2209 = vmatprep.subr.mxu0 0.0
      %2210 = vmatpush1.msra.mxu0 0.0
      %2211 = vmatprep.subr.mxu0 0.0
      %2212 = vmatpush1.msra.mxu0 0.0
      %2213 = vmatprep.subr.mxu0 0.0
      %2214 = vmatpush1.msra.mxu0 0.0
      %2215 = vmatprep.subr.mxu0 0.0
      %2216 = vmatpush1.msra.mxu0 0.0
      %2217 = vmatprep.subr.mxu0 0.0
      %2218 = vmatpush1.msra.mxu0 0.0
      %2219 = vmatprep.subr.mxu0 0.0
      %2220 = vmatpush1.msra.mxu0 0.0
      %2221 = vmatprep.subr.mxu0 0.0
      %2222 = vmatpush1.msra.mxu0 0.0
      %2223 = vmatprep.subr.mxu0 0.0
      %2224 = vmatpush1.msra.mxu0 0.0
      %2225 = vmatprep.subr.mxu0 0.0
      %2226 = vmatpush1.msra.mxu0 0.0
      %2227 = vmatprep.subr.mxu0 0.0
      %2228 = vmatpush1.msra.mxu0 0.0
      %2229 = vmatprep.subr.mxu0 0.0
      %2230 = vmatpush1.msra.mxu0 0.0
      %2231 = vmatprep.subr.mxu0 0.0
      %2232 = vmatpush1.msra.mxu0 0.0
      %2233 = vmatprep.subr.mxu0 0.0
      %2234 = vmatpush1.msra.mxu0 0.0
      %2235 = vmatprep.subr.mxu0 0.0
      %2236 = vmatpush1.msra.mxu0 0.0
      %2237 = vmatprep.subr.mxu0 0.0
      %2238 = vmatpush1.msra.mxu0 0.0
      %2239 = vmatprep.subr.mxu0 0.0
      %2240 = vmatpush1.msra.mxu0 0.0
      %2241 = vmatprep.subr.mxu0 0.0
      %2242 = vmatpush1.msra.mxu0 0.0
      %2243 = vmatprep.subr.mxu0 0.0
      %2244 = vmatpush1.msra.mxu0 0.0
      %2245 = vmatprep.subr.mxu0 0.0
      %2246 = vmatpush1.msra.mxu0 0.0
      %2247 = vmatprep.subr.mxu0 0.0
      %2248 = vmatpush1.msra.mxu0 0.0
      %2249 = vmatprep.subr.mxu0 0.0
      %2250 = vmatpush1.msra.mxu0 0.0
      %2251 = vmatprep.subr.mxu0 0.0
      %2252 = vmatpush1.msra.mxu0 0.0
      %2253 = vmatprep.subr.mxu0 0.0
      %2254 = vmatpush1.msra.mxu0 0.0
      %2255 = vmatprep.mubr.f32.mxu0 0.0
      %2256 = vmatmul.mubr.f32.gmra.mrb[0].mxu0 %v2189
      %v2257 = vpop.f32.mrb[0].mxu0
      %v2258 = vadd.f32 0.0, %v2257
      %v2259 = vpop.f32.mrb[0].mxu0
      %v2260 = vadd.f32 0.0, %v2259
      %2261 = vdwg.mxu0
      %v2262 = vsel %vm2188, %v1831, 0
      %2264 = vmatprep.subr.mxu0 %v2106
      %2265 = vmatpush1.msra.mxu0 %v2105
      %2266 = vmatprep.subr.mxu0 %v2108
      %2267 = vmatpush1.msra.mxu0 %v2107
      %2268 = vmatprep.subr.mxu0 %v2110
      %2269 = vmatpush1.msra.mxu0 %v2109
      %2270 = vmatprep.subr.mxu0 %v2112
      %2271 = vmatpush1.msra.mxu0 %v2111
      %2272 = vmatprep.subr.mxu0 0.0
      %2273 = vmatpush1.msra.mxu0 0.0
      %2274 = vmatprep.subr.mxu0 0.0
      %2275 = vmatpush1.msra.mxu0 0.0
      %2276 = vmatprep.subr.mxu0 0.0
      %2277 = vmatpush1.msra.mxu0 0.0
      %2278 = vmatprep.subr.mxu0 0.0
      %2279 = vmatpush1.msra.mxu0 0.0
      %2280 = vmatprep.subr.mxu0 0.0
      %2281 = vmatpush1.msra.mxu0 0.0
      %2282 = vmatprep.subr.mxu0 0.0
      %2283 = vmatpush1.msra.mxu0 0.0
      %2284 = vmatprep.subr.mxu0 0.0
      %2285 = vmatpush1.msra.mxu0 0.0
      %2286 = vmatprep.subr.mxu0 0.0
      %2287 = vmatpush1.msra.mxu0 0.0
      %2288 = vmatprep.subr.mxu0 0.0
      %2289 = vmatpush1.msra.mxu0 0.0
      %2290 = vmatprep.subr.mxu0 0.0
      %2291 = vmatpush1.msra.mxu0 0.0
      %2292 = vmatprep.subr.mxu0 0.0
      %2293 = vmatpush1.msra.mxu0 0.0
      %2294 = vmatprep.subr.mxu0 0.0
      %2295 = vmatpush1.msra.mxu0 0.0
      %2296 = vmatprep.subr.mxu0 0.0
      %2297 = vmatpush1.msra.mxu0 0.0
      %2298 = vmatprep.subr.mxu0 0.0
      %2299 = vmatpush1.msra.mxu0 0.0
      %2300 = vmatprep.subr.mxu0 0.0
      %2301 = vmatpush1.msra.mxu0 0.0
      %2302 = vmatprep.subr.mxu0 0.0
      %2303 = vmatpush1.msra.mxu0 0.0
      %2304 = vmatprep.subr.mxu0 0.0
      %2305 = vmatpush1.msra.mxu0 0.0
      %2306 = vmatprep.subr.mxu0 0.0
      %2307 = vmatpush1.msra.mxu0 0.0
      %2308 = vmatprep.subr.mxu0 0.0
      %2309 = vmatpush1.msra.mxu0 0.0
      %2310 = vmatprep.subr.mxu0 0.0
      %2311 = vmatpush1.msra.mxu0 0.0
      %2312 = vmatprep.subr.mxu0 0.0
      %2313 = vmatpush1.msra.mxu0 0.0
      %2314 = vmatprep.subr.mxu0 0.0
      %2315 = vmatpush1.msra.mxu0 0.0
      %2316 = vmatprep.subr.mxu0 0.0
      %2317 = vmatpush1.msra.mxu0 0.0
      %2318 = vmatprep.subr.mxu0 0.0
      %2319 = vmatpush1.msra.mxu0 0.0
      %2320 = vmatprep.subr.mxu0 0.0
      %2321 = vmatpush1.msra.mxu0 0.0
      %2322 = vmatprep.subr.mxu0 0.0
      %2323 = vmatpush1.msra.mxu0 0.0
      %2324 = vmatprep.subr.mxu0 0.0
      %2325 = vmatpush1.msra.mxu0 0.0
      %2326 = vmatprep.subr.mxu0 0.0
      %2327 = vmatpush1.msra.mxu0 0.0
      %2328 = vmatprep.mubr.f32.mxu0 0.0
      %2329 = vmatmul.mubr.f32.gmra.mrb[0].mxu0 %v2262
      %v2330 = vpop.f32.mrb[0].mxu0
      %v2331 = vadd.f32 %v2258, %v2330
      %v2332 = vpop.f32.mrb[0].mxu0
      %v2333 = vadd.f32 %v2260, %v2332
      %2334 = vdwg.mxu0
      %v2335 = vmax.f32 %v1995, %v2007
      %v2336 = vmax.f32 %v2001, %v2013
      %v2337 = vmax.f32 %v2335, %v2336
      %v2338 = vrot.slane %v2337, 4
      %v2339 = vmax.f32 %v2337, %v2338
      %v2340 = vrot.slane %v2339, 2
      %v2341 = vmax.f32 %v2339, %v2340
      %v2342 = vrot.slane %v2341, 1
      %v2343 = vmax.f32 %v2341, %v2342
      %v2344 = vmax.f32 %v1997, %v2009
      %v2345 = vmax.f32 %v2003, %v2015
      %v2346 = vmax.f32 %v2344, %v2345
      %v2347 = vrot.slane %v2346, 4
      %v2348 = vmax.f32 %v2346, %v2347
      %v2349 = vrot.slane %v2348, 2
      %v2350 = vmax.f32 %v2348, %v2349
      %v2351 = vrot.slane %v2350, 1
      %v2352 = vmax.f32 %v2350, %v2351
      %v2353 = vsub.f32 %v1995, %v2343
      %v2354 = vsub.f32 %v1997, %v2352
      %v2355 = vsub.f32 %v2001, %v2343
      %v2356 = vsub.f32 %v2003, %v2352
      %v2357 = vsub.f32 %v2007, %v2343
      %v2358 = vsub.f32 %v2009, %v2352
      %v2359 = vsub.f32 %v2013, %v2343
      %v2360 = vsub.f32 %v2015, %v2352
      %v2361 = vmul.f32 %v2353, 1.442695
      %v2362 = vpow.pop %v2361
      %v2363 = vmul.f32 %v2354, 1.442695
      %v2364 = vpow.pop %v2363
      %v2365 = vmul.f32 %v2355, 1.442695
      %v2366 = vpow.pop %v2365
      %v2367 = vmul.f32 %v2356, 1.442695
      %v2368 = vpow.pop %v2367
      %v2369 = vmul.f32 %v2357, 1.442695
      %v2370 = vpow.pop %v2369
      %v2371 = vmul.f32 %v2358, 1.442695
      %v2372 = vpow.pop %v2371
      %v2373 = vmul.f32 %v2359, 1.442695
      %v2374 = vpow.pop %v2373
      %v2375 = vmul.f32 %v2360, 1.442695
      %v2376 = vpow.pop %v2375
      %v2377 = vadd.f32 %v2362, %v2366
      %v2378 = vadd.f32 %v2377, %v2370
      %v2379 = vadd.f32 %v2378, %v2374
      %v2380 = vrot.slane %v2379, 4
      %v2381 = vadd.f32 %v2379, %v2380
      %v2382 = vrot.slane %v2381, 2
      %v2383 = vadd.f32 %v2381, %v2382
      %v2384 = vrot.slane %v2383, 1
      %v2385 = vadd.f32 %v2383, %v2384
      %v2386 = vadd.f32 %v2364, %v2368
      %v2387 = vadd.f32 %v2386, %v2372
      %v2388 = vadd.f32 %v2387, %v2376
      %v2389 = vrot.slane %v2388, 4
      %v2390 = vadd.f32 %v2388, %v2389
      %v2391 = vrot.slane %v2390, 2
      %v2392 = vadd.f32 %v2390, %v2391
      %v2393 = vrot.slane %v2392, 1
      %v2394 = vadd.f32 %v2392, %v2393
      %v2395 = vrcp.pop %v2385
      %v2396 = vmul.f32 1.0, %v2395
      %v2397 = vrcp.pop %v2394
      %v2398 = vmul.f32 1.0, %v2397
      %v2399 = vmul.f32 %v2362, %v2396
      %v2400 = vmul.f32 %v2364, %v2398
      %v2401 = vmul.f32 %v2366, %v2396
      %v2402 = vmul.f32 %v2368, %v2398
      %v2403 = vmul.f32 %v2370, %v2396
      %v2404 = vmul.f32 %v2372, %v2398
      %v2405 = vmul.f32 %v2374, %v2396
      %v2406 = vmul.f32 %v2376, %v2398
      %2407 = vrot.lane.b32.xlu0 %v1831, 64
      %v2408 = vpop.permute.xlu0 %2407
      %v2409 = vsel %vm2188, %v2408, 0
      %2411 = vmatprep.subr.mxu0 %v2400
      %2412 = vmatpush1.msra.mxu0 %v2399
      %2413 = vmatprep.subr.mxu0 %v2402
      %2414 = vmatpush1.msra.mxu0 %v2401
      %2415 = vmatprep.subr.mxu0 %v2404
      %2416 = vmatpush1.msra.mxu0 %v2403
      %2417 = vmatprep.subr.mxu0 %v2406
      %2418 = vmatpush1.msra.mxu0 %v2405
      %2419 = vmatprep.subr.mxu0 0.0
      %2420 = vmatpush1.msra.mxu0 0.0
      %2421 = vmatprep.subr.mxu0 0.0
      %2422 = vmatpush1.msra.mxu0 0.0
      %2423 = vmatprep.subr.mxu0 0.0
      %2424 = vmatpush1.msra.mxu0 0.0
      %2425 = vmatprep.subr.mxu0 0.0
      %2426 = vmatpush1.msra.mxu0 0.0
      %2427 = vmatprep.subr.mxu0 0.0
      %2428 = vmatpush1.msra.mxu0 0.0
      %2429 = vmatprep.subr.mxu0 0.0
      %2430 = vmatpush1.msra.mxu0 0.0
      %2431 = vmatprep.subr.mxu0 0.0
      %2432 = vmatpush1.msra.mxu0 0.0
      %2433 = vmatprep.subr.mxu0 0.0
      %2434 = vmatpush1.msra.mxu0 0.0
      %2435 = vmatprep.subr.mxu0 0.0
      %2436 = vmatpush1.msra.mxu0 0.0
      %2437 = vmatprep.subr.mxu0 0.0
      %2438 = vmatpush1.msra.mxu0 0.0
      %2439 = vmatprep.subr.mxu0 0.0
      %2440 = vmatpush1.msra.mxu0 0.0
      %2441 = vmatprep.subr.mxu0 0.0
      %2442 = vmatpush1.msra.mxu0 0.0
      %2443 = vmatprep.subr.mxu0 0.0
      %2444 = vmatpush1.msra.mxu0 0.0
      %2445 = vmatprep.subr.mxu0 0.0
      %2446 = vmatpush1.msra.mxu0 0.0
      %2447 = vmatprep.subr.mxu0 0.0
      %2448 = vmatpush1.msra.mxu0 0.0
      %2449 = vmatprep.subr.mxu0 0.0
      %2450 = vmatpush1.msra.mxu0 0.0
      %2451 = vmatprep.subr.mxu0 0.0
      %2452 = vmatpush1.msra.mxu0 0.0
      %2453 = vmatprep.subr.mxu0 0.0
      %2454 = vmatpush1.msra.mxu0 0.0
      %2455 = vmatprep.subr.mxu0 0.0
      %2456 = vmatpush1.msra.mxu0 0.0
      %2457 = vmatprep.subr.mxu0 0.0
      %2458 = vmatpush1.msra.mxu0 0.0
      %2459 = vmatprep.subr.mxu0 0.0
      %2460 = vmatpush1.msra.mxu0 0.0
      %2461 = vmatprep.subr.mxu0 0.0
      %2462 = vmatpush1.msra.mxu0 0.0
      %2463 = vmatprep.subr.mxu0 0.0
      %2464 = vmatpush1.msra.mxu0 0.0
      %2465 = vmatprep.subr.mxu0 0.0
      %2466 = vmatpush1.msra.mxu0 0.0
      %2467 = vmatprep.subr.mxu0 0.0
      %2468 = vmatpush1.msra.mxu0 0.0
      %2469 = vmatprep.subr.mxu0 0.0
      %2470 = vmatpush1.msra.mxu0 0.0
      %2471 = vmatprep.subr.mxu0 0.0
      %2472 = vmatpush1.msra.mxu0 0.0
      %2473 = vmatprep.subr.mxu0 0.0
      %2474 = vmatpush1.msra.mxu0 0.0
      %2475 = vmatprep.mubr.f32.mxu0 0.0
      %2476 = vmatmul.mubr.f32.gmra.mrb[0].mxu0 %v2409
      %v2477 = vpop.f32.mrb[0].mxu0
      %v2478 = vadd.f32 0.0, %v2477
      %v2479 = vpop.f32.mrb[0].mxu0
      %v2480 = vadd.f32 0.0, %v2479
      %2481 = vdwg.mxu0
      %v2482 = vadd.f32 %v2331, %v2478
      %v2483 = vadd.f32 %v2333, %v2480
      %v2484 = vmax.f32 %v2019, %v2031
      %v2485 = vmax.f32 %v2025, %v2037
      %v2486 = vmax.f32 %v2484, %v2485
      %v2487 = vrot.slane %v2486, 4
      %v2488 = vmax.f32 %v2486, %v2487
      %v2489 = vrot.slane %v2488, 2
      %v2490 = vmax.f32 %v2488, %v2489
      %v2491 = vrot.slane %v2490, 1
      %v2492 = vmax.f32 %v2490, %v2491
      %v2493 = vmax.f32 %v2021, %v2033
      %v2494 = vmax.f32 %v2027, %v2039
      %v2495 = vmax.f32 %v2493, %v2494
      %v2496 = vrot.slane %v2495, 4
      %v2497 = vmax.f32 %v2495, %v2496
      %v2498 = vrot.slane %v2497, 2
      %v2499 = vmax.f32 %v2497, %v2498
      %v2500 = vrot.slane %v2499, 1
      %v2501 = vmax.f32 %v2499, %v2500
      %v2502 = vsub.f32 %v2019, %v2492
      %v2503 = vsub.f32 %v2021, %v2501
      %v2504 = vsub.f32 %v2025, %v2492
      %v2505 = vsub.f32 %v2027, %v2501
      %v2506 = vsub.f32 %v2031, %v2492
      %v2507 = vsub.f32 %v2033, %v2501
      %v2508 = vsub.f32 %v2037, %v2492
      %v2509 = vsub.f32 %v2039, %v2501
      %v2510 = vmul.f32 %v2502, 1.442695
      %v2511 = vpow.pop %v2510
      %v2512 = vmul.f32 %v2503, 1.442695
      %v2513 = vpow.pop %v2512
      %v2514 = vmul.f32 %v2504, 1.442695
      %v2515 = vpow.pop %v2514
      %v2516 = vmul.f32 %v2505, 1.442695
      %v2517 = vpow.pop %v2516
      %v2518 = vmul.f32 %v2506, 1.442695
      %v2519 = vpow.pop %v2518
      %v2520 = vmul.f32 %v2507, 1.442695
      %v2521 = vpow.pop %v2520
      %v2522 = vmul.f32 %v2508, 1.442695
      %v2523 = vpow.pop %v2522
      %v2524 = vmul.f32 %v2509, 1.442695
      %v2525 = vpow.pop %v2524
      %v2526 = vadd.f32 %v2511, %v2515
      %v2527 = vadd.f32 %v2526, %v2519
      %v2528 = vadd.f32 %v2527, %v2523
      %v2529 = vrot.slane %v2528, 4
      %v2530 = vadd.f32 %v2528, %v2529
      %v2531 = vrot.slane %v2530, 2
      %v2532 = vadd.f32 %v2530, %v2531
      %v2533 = vrot.slane %v2532, 1
      %v2534 = vadd.f32 %v2532, %v2533
      %v2535 = vadd.f32 %v2513, %v2517
      %v2536 = vadd.f32 %v2535, %v2521
      %v2537 = vadd.f32 %v2536, %v2525
      %v2538 = vrot.slane %v2537, 4
      %v2539 = vadd.f32 %v2537, %v2538
      %v2540 = vrot.slane %v2539, 2
      %v2541 = vadd.f32 %v2539, %v2540
      %v2542 = vrot.slane %v2541, 1
      %v2543 = vadd.f32 %v2541, %v2542
      %v2544 = vrcp.pop %v2534
      %v2545 = vmul.f32 1.0, %v2544
      %v2546 = vrcp.pop %v2543
      %v2547 = vmul.f32 1.0, %v2546
      %v2548 = vmul.f32 %v2511, %v2545
      %v2549 = vmul.f32 %v2513, %v2547
      %v2550 = vmul.f32 %v2515, %v2545
      %v2551 = vmul.f32 %v2517, %v2547
      %v2552 = vmul.f32 %v2519, %v2545
      %v2553 = vmul.f32 %v2521, %v2547
      %v2554 = vmul.f32 %v2523, %v2545
      %v2555 = vmul.f32 %v2525, %v2547
      %2556 = vrot.lane.b32.xlu0 %v1831, 32
      %v2557 = vpop.permute.xlu0 %2556
      %v2558 = vsel %vm2188, %v2557, 0
      %2560 = vmatprep.subr.mxu0 %v2549
      %2561 = vmatpush1.msra.mxu0 %v2548
      %2562 = vmatprep.subr.mxu0 %v2551
      %2563 = vmatpush1.msra.mxu0 %v2550
      %2564 = vmatprep.subr.mxu0 %v2553
      %2565 = vmatpush1.msra.mxu0 %v2552
      %2566 = vmatprep.subr.mxu0 %v2555
      %2567 = vmatpush1.msra.mxu0 %v2554
      %2568 = vmatprep.subr.mxu0 0.0
      %2569 = vmatpush1.msra.mxu0 0.0
      %2570 = vmatprep.subr.mxu0 0.0
      %2571 = vmatpush1.msra.mxu0 0.0
      %2572 = vmatprep.subr.mxu0 0.0
      %2573 = vmatpush1.msra.mxu0 0.0
      %2574 = vmatprep.subr.mxu0 0.0
      %2575 = vmatpush1.msra.mxu0 0.0
      %2576 = vmatprep.subr.mxu0 0.0
      %2577 = vmatpush1.msra.mxu0 0.0
      %2578 = vmatprep.subr.mxu0 0.0
      %2579 = vmatpush1.msra.mxu0 0.0
      %2580 = vmatprep.subr.mxu0 0.0
      %2581 = vmatpush1.msra.mxu0 0.0
      %2582 = vmatprep.subr.mxu0 0.0
      %2583 = vmatpush1.msra.mxu0 0.0
      %2584 = vmatprep.subr.mxu0 0.0
      %2585 = vmatpush1.msra.mxu0 0.0
      %2586 = vmatprep.subr.mxu0 0.0
      %2587 = vmatpush1.msra.mxu0 0.0
      %2588 = vmatprep.subr.mxu0 0.0
      %2589 = vmatpush1.msra.mxu0 0.0
      %2590 = vmatprep.subr.mxu0 0.0
      %2591 = vmatpush1.msra.mxu0 0.0
      %2592 = vmatprep.subr.mxu0 0.0
      %2593 = vmatpush1.msra.mxu0 0.0
      %2594 = vmatprep.subr.mxu0 0.0
      %2595 = vmatpush1.msra.mxu0 0.0
      %2596 = vmatprep.subr.mxu0 0.0
      %2597 = vmatpush1.msra.mxu0 0.0
      %2598 = vmatprep.subr.mxu0 0.0
      %2599 = vmatpush1.msra.mxu0 0.0
      %2600 = vmatprep.subr.mxu0 0.0
      %2601 = vmatpush1.msra.mxu0 0.0
      %2602 = vmatprep.subr.mxu0 0.0
      %2603 = vmatpush1.msra.mxu0 0.0
      %2604 = vmatprep.subr.mxu0 0.0
      %2605 = vmatpush1.msra.mxu0 0.0
      %2606 = vmatprep.subr.mxu0 0.0
      %2607 = vmatpush1.msra.mxu0 0.0
      %2608 = vmatprep.subr.mxu0 0.0
      %2609 = vmatpush1.msra.mxu0 0.0
      %2610 = vmatprep.subr.mxu0 0.0
      %2611 = vmatpush1.msra.mxu0 0.0
      %2612 = vmatprep.subr.mxu0 0.0
      %2613 = vmatpush1.msra.mxu0 0.0
      %2614 = vmatprep.subr.mxu0 0.0
      %2615 = vmatpush1.msra.mxu0 0.0
      %2616 = vmatprep.subr.mxu0 0.0
      %2617 = vmatpush1.msra.mxu0 0.0
      %2618 = vmatprep.subr.mxu0 0.0
      %2619 = vmatpush1.msra.mxu0 0.0
      %2620 = vmatprep.subr.mxu0 0.0
      %2621 = vmatpush1.msra.mxu0 0.0
      %2622 = vmatprep.subr.mxu0 0.0
      %2623 = vmatpush1.msra.mxu0 0.0
      %2624 = vmatprep.mubr.f32.mxu0 0.0
      %2625 = vmatmul.mubr.f32.gmra.mrb[0].mxu0 %v2558
      %v2626 = vpop.f32.mrb[0].mxu0
      %v2627 = vadd.f32 0.0, %v2626
      %v2628 = vpop.f32.mrb[0].mxu0
      %v2629 = vadd.f32 0.0, %v2628
      %2630 = vdwg.mxu0
      %v2631 = vadd.f32 %v2482, %v2627
      %v2632 = vadd.f32 %v2483, %v2629
      %2634 = vset.pattern.permute.xlu0 0
      %2635 = vperm.xlu0 %2634, %v438
      %v2636 = vpop.permute.xlu0 %2635
      %v2638 = vadd.f32 %v2631, %v2636
      %v2639 = vadd.f32 %v2632, %v2636
      %v2640 = vmul.f32 %v2638, %v2638
      %v2641 = vmul.f32 %v2639, %v2639
      %v2642 = vsel %vm492, %v2640, 0.0
      %v2643 = vrot.slane %v2642, 4
      %v2644 = vadd.f32 %v2642, %v2643
      %v2645 = vrot.slane %v2644, 2
      %v2646 = vadd.f32 %v2644, %v2645
      %v2647 = vrot.slane %v2646, 1
      %v2648 = vadd.f32 %v2646, %v2647
      %v2649 = vsel %vm492, %v2641, 0.0
      %v2650 = vrot.slane %v2649, 4
      %v2651 = vadd.f32 %v2649, %v2650
      %v2652 = vrot.slane %v2651, 2
      %v2653 = vadd.f32 %v2651, %v2652
      %v2654 = vrot.slane %v2653, 1
      %v2655 = vadd.f32 %v2653, %v2654
      %v2656 = vmax.f32 %v2648, 1e-24
      %v2657 = vmax.f32 %v2655, 1e-24
      %v2658 = vrsqrt.pop %v2656
      %v2659 = vrsqrt.pop %v2657
      %v2660 = vmul.f32 %v2638, %v2658
      %v2661 = vmul.f32 %v2639, %v2659
      %2663 = vset.pattern.permute.xlu0 0
      %2664 = vperm.xlu0 %2663, %v437
      %v2665 = vpop.permute.xlu0 %2664
      %v2667 = vmul.f32 %v2660, %v2665
      %v2668 = vmul.f32 %v2661, %v2665
      %v2671 = vcombine.low %v2667, %v2668
      %2673 = vst [vmem:[%s386] sm:$0xff] %v2671
      %p2674 = scmp.lt.s32.totalorder %s22, 1
      %s2675 = scalar_select %p2674, %s22, 1
      %s2676 = smul.addr %s2675, 2
      %s2677 = smul.addr %s2676, 4
      %s2678 = scalar_lea.vmem %s11, %s2677
      // Predicated region
      $region65: #{linear_attention_pallas.1} parent=63 // pred_check
        %p2679 = pneg %p276
      $region66: #{linear_attention_pallas.1} parent=63 // pred_check_branch
        %2681 = sbr.rel (%p2679) target = $region68
      $region67: #{linear_attention_pallas.1} parent=63 // pred_region
        _
      $region68: #{linear_attention_pallas.1} parent=63 // pred_fallthru
        _
    $region64: #{linear_attention_pallas.1} parent=5 // pred_fallthru
      _
    %p2682 = scmp.le.s32.totalorder 2, %s17
    // Predicated region
    $region69: #{linear_attention_pallas.1} parent=5 // pred_check
      %p2683 = pneg %p2682
    $region70: #{linear_attention_pallas.1} parent=5 // pred_check_branch
      %2685 = sbr.rel (%p2683) target = $region72
    $region71: #{linear_attention_pallas.1} parent=5 // pred_region
      %s2686 = ssub.s32 %s17, 2
      // Predicated region
      $region73: #{linear_attention_pallas.1} parent=71 // pred_check
        %p2687 = pneg %p282
      $region74: #{linear_attention_pallas.1} parent=71 // pred_check_branch
        %2689 = sbr.rel (%p2687) target = $region76
      $region75: #{linear_attention_pallas.1} parent=71 // pred_region
        %p2690 = scmp.lt.s32.totalorder %s23, 1
        %s2691 = scalar_select %p2690, %s23, 1
        %s2692 = smul.addr %s2691, 2
        %s2693 = smul.addr %s2692, 4
        %s2694 = scalar_lea.vmem %s11, %s2693
      $region76: #{linear_attention_pallas.1} parent=71 // pred_fallthru
        _
    $region72: #{linear_attention_pallas.1} parent=5 // pred_fallthru
      _
  $region6: #{linear_attention_pallas.1} parent=0 // loop_footer
    %s21 = sadd.s32 1, %s17
  $region7: #{linear_attention_pallas.1} parent=0 // loop_footer_branch
    %16 = sbr.rel target = $region3
  $region8: #{linear_attention_pallas.1} parent=0 // loop_exit
    _

</llo_original>
